<compile_context>
chip_gen: v7x
topology: tpu7x:2x2x1
jax: 0.10.0
libtpu: 0.0.40
codegen_flags: <defaults>
</compile_context>

<pallas_src>
import math
import jax
import jax.numpy as jnp
from jax.experimental import pallas as pl
from jax.experimental.pallas import tpu as pltpu


def _round_up(n, m):
    return ((n + m - 1) // m) * m


def _cell_from_gates(gates, c, D):
    """LSTM cell update given pre-activation gates (PyTorch order i, f, g, o).

    One sigmoid + one tanh over the full (B, 4D) gates block (EUP), then slice.
    """
    s = jax.nn.sigmoid(gates)
    t = jnp.tanh(gates)
    i = s[:, 0 * D:1 * D]
    f = s[:, 1 * D:2 * D]
    g = t[:, 2 * D:3 * D]
    o = s[:, 3 * D:4 * D]
    c_new = f * c + i * g
    h_new = o * jnp.tanh(c_new)
    return h_new, c_new


def tae_kernel(x_ref, wslab_ref, wout_ref, code_ref, out_ref, hs_ref):
    # x_ref    : (W, Bb, Cp)   time-major, batch/channel padded input
    # wslab_ref: (Cp + 3D + 2, 4D)  [w_x | whh_e | whh_d | w_comb_d | b_x | b_d]
    # wout_ref : (D + 1, C)    [w_dec_t | b_dec]
    # code_ref : (Bb, D)       encoder final hidden state
    # out_ref  : (W, Bb, C)    time-major reconstruction
    # hs_ref   : (W, Bb, D)    VMEM scratch for decoder hidden states
    W, Bb, Cp = x_ref.shape
    D = hs_ref.shape[2]
    G = 4 * D
    C = out_ref.shape[2]

    # Static ref-slices of the packed weight slab (offsets are sublane-aligned:
    # Cp and D are multiples of 8).
    w_x = wslab_ref[0:Cp, :]
    whh_e = wslab_ref[Cp:Cp + D, :]
    whh_d = wslab_ref[Cp + D:Cp + 2 * D, :]
    w_comb = wslab_ref[Cp + 2 * D:Cp + 3 * D, :]
    b_x = wslab_ref[Cp + 3 * D:Cp + 3 * D + 1, :]
    b_d = wslab_ref[Cp + 3 * D + 1:Cp + 3 * D + 2, :]

    x = x_ref[...].astype(jnp.float32)

    # ---- encoder: all input-to-hidden work hoisted OFF the serial chain ----
    # instance_encoder Linear is already folded into (w_x, b_x) host-side.
    gates_x = (jnp.dot(x.reshape(W * Bb, Cp), w_x,
                       preferred_element_type=jnp.float32)
               + b_x).reshape(W, Bb, G)

    # t = 0: h == 0 so the recurrent matmul vanishes.
    c = jnp.zeros((Bb, D), jnp.float32)
    h, c = _cell_from_gates(gates_x[0], c, D)
    for t in range(1, W):                        # W is static & small: unroll
        gates = gates_x[t] + jnp.dot(h, whh_e,
                                     preferred_element_type=jnp.float32)
        h, c = _cell_from_gates(gates, c, D)

    # code_vec = h_n  -> (Bb, D)
    code_ref[...] = h.astype(code_ref.dtype)

    # ---- decoder: one matmul per serial step -------------------------------
    # step 0 : input == 0       -> gates = h_enc @ W_hh^T + b
    # step>=1: input == hidden  -> gates = h     @ (W_ih^T + W_hh^T) + b
    b_d_b = jnp.broadcast_to(b_d, (Bb, G))       # hoisted: one broadcast total

    gates = jnp.dot(h, whh_d, preferred_element_type=jnp.float32) + b_d_b
    hd, cd = _cell_from_gates(gates, c, D)
    hs_ref[0] = hd
    for t in range(1, W):
        gates = jnp.dot(hd, w_comb, preferred_element_type=jnp.float32) + b_d_b
        hd, cd = _cell_from_gates(gates, cd, D)
        hs_ref[t] = hd

    # Single post-loop output Linear over all W steps + one dense store.
    w_dec = wout_ref[0:D, :]
    b_dec = wout_ref[D:D + 1, :]
    hseq = hs_ref[...].reshape(W * Bb, D)
    out = (jnp.dot(hseq, w_dec, preferred_element_type=jnp.float32) + b_dec)
    out_ref[...] = out.reshape(W, Bb, C).astype(out_ref.dtype)


def pack_params(params, in_channels, code_dim):
    """Host-side, one-time folding and packing of all weights into 2 slabs."""
    C, D = in_channels, code_dim
    Cp = _round_up(C, 8)

    # Fold instance_encoder Linear into the encoder input projection.
    w_x = params["w_enc_t"] @ params["wih_e_t"]                    # (C, 4D)
    b_x = params["b_enc"] @ params["wih_e_t"] + params["b_e"]      # (1, 4D)
    w_x = jnp.pad(w_x, ((0, Cp - C), (0, 0)))                      # (Cp, 4D)

    # Decoder input == previous hidden -> fold W_ih^T + W_hh^T once.
    w_comb = params["wih_d_t"] + params["whh_d_t"]                 # (D, 4D)

    wslab = jnp.concatenate(
        [w_x, params["whh_e_t"], params["whh_d_t"], w_comb,
         b_x, params["b_d"]], axis=0)                              # (Cp+3D+2, 4D)
    wout = jnp.concatenate([params["w_dec_t"], params["b_dec"]],
                           axis=0)                                 # (D+1, C)
    return {"wslab": wslab, "wout": wout}


def tae_forward(x, packed, *, batch_block=None):
    """batch_block=None keeps one whole-batch block (grid=(1,), right choice on
    v5e/v6e). Pass a multiple of 8 that divides the padded batch to shard the
    independent batch recurrences across TensorCores (v7x with large batch)."""
    B, W, C = x.shape
    wslab, wout = packed["wslab"], packed["wout"]
    D = wout.shape[0] - 1
    Cp = _round_up(C, 8)

    Bp = _round_up(B, 8)
    if batch_block is None or batch_block >= Bp:
        batch_block = Bp
    else:
        batch_block = max(8, _round_up(batch_block, 8))
        if Bp % batch_block != 0:
            batch_block = Bp
    nblk = Bp // batch_block

    # Time-major, batch- and channel-padded input: (W, Bp, Cp).
    x_tm = jnp.transpose(x.astype(jnp.float32), (1, 0, 2))
    x_tm = jnp.pad(x_tm, ((0, 0), (0, Bp - B), (0, Cp - C)))

    grid_spec = pltpu.PrefetchScalarGridSpec(
        num_scalar_prefetch=0,
        grid=(nblk,),
        in_specs=[
            pl.BlockSpec((W, batch_block, Cp), lambda i: (0, i, 0)),
            pl.BlockSpec(wslab.shape, lambda i: (0, 0)),
            pl.BlockSpec(wout.shape, lambda i: (0, 0)),
        ],
        out_specs=(pl.BlockSpec((batch_block, D), lambda i: (i, 0)),
                   pl.BlockSpec((W, batch_block, C), lambda i: (0, i, 0))),
        scratch_shapes=[pltpu.VMEM((W, batch_block, D), jnp.float32)],
    )
    code_p, out_tm = pl.pallas_call(
        tae_kernel,
        out_shape=(jax.ShapeDtypeStruct((Bp, D), jnp.float32),
                   jax.ShapeDtypeStruct((W, Bp, C), jnp.float32)),
        grid_spec=grid_spec,
        compiler_params=pltpu.CompilerParams(
            dimension_semantics=("parallel",)),
    )(x_tm, wslab, wout)

    code = code_p[:B]
    out = jnp.transpose(out_tm, (1, 0, 2))[:B]
    return code, out


def init_params(key, in_channels, code_dim):
    """Deterministic synthetic init mirroring the module's parameter shapes."""
    C, D = in_channels, code_dim
    ks = jax.random.split(key, 12)

    def xavier(k, shape):                       # Linear weights (xavier_uniform_)
        fan_out, fan_in = shape
        bound = math.sqrt(6.0 / (fan_in + fan_out))
        return jax.random.uniform(k, shape, jnp.float32, -bound, bound)

    def uni(k, shape, fan):                     # LSTM / bias default init
        bound = 1.0 / math.sqrt(fan)
        return jax.random.uniform(k, shape, jnp.float32, -bound, bound)

    # instance_encoder: Linear(C -> D)
    w_enc = xavier(ks[0], (D, C))
    b_enc = uni(ks[1], (1, D), C)
    # temporal_encoder: LSTM(D -> D)
    wih_e = uni(ks[2], (4 * D, D), D)
    whh_e = uni(ks[3], (4 * D, D), D)
    b_e = uni(ks[4], (1, 4 * D), D) + uni(ks[5], (1, 4 * D), D)   # b_ih + b_hh
    # temporal_decoder: LSTM(D -> D)
    wih_d = uni(ks[6], (4 * D, D), D)
    whh_d = uni(ks[7], (4 * D, D), D)
    b_d = uni(ks[8], (1, 4 * D), D) + uni(ks[9], (1, 4 * D), D)
    # instance_decoder: Linear(D -> C)
    w_dec = xavier(ks[10], (C, D))
    b_dec = uni(ks[11], (1, C), D)

    return {
        "w_enc_t": w_enc.T, "b_enc": b_enc,
        "wih_e_t": wih_e.T, "whh_e_t": whh_e.T, "b_e": b_e,
        "wih_d_t": wih_d.T, "whh_d_t": whh_d.T, "b_d": b_d,
        "w_dec_t": w_dec.T, "b_dec": b_dec,
    }


def tae_reference(x, params):
    """Pure-JAX reference with the ORIGINAL (unfused) math, for correctness."""
    B, W, C = x.shape
    D = params["w_enc_t"].shape[1]

    def cell(x_t, h, c, wih_t, whh_t, b):
        gates = x_t @ wih_t + h @ whh_t + b
        i = jax.nn.sigmoid(gates[:, :D])
        f = jax.nn.sigmoid(gates[:, D:2 * D])
        g = jnp.tanh(gates[:, 2 * D:3 * D])
        o = jax.nn.sigmoid(gates[:, 3 * D:])
        c_new = f * c + i * g
        return o * jnp.tanh(c_new), c_new

    enc = x.reshape(B * W, C) @ params["w_enc_t"] + params["b_enc"]
    enc = enc.reshape(B, W, D)
    h = jnp.zeros((B, D), jnp.float32)
    c = jnp.zeros((B, D), jnp.float32)
    for t in range(W):
        h, c = cell(enc[:, t, :], h, c,
                    params["wih_e_t"], params["whh_e_t"], params["b_e"])
    code = h
    inp = jnp.zeros((B, D), jnp.float32)
    hd, cd = h, c
    outs = []
    for t in range(W):
        hd, cd = cell(inp, hd, cd,
                      params["wih_d_t"], params["whh_d_t"], params["b_d"])
        inp = hd
        outs.append(hd @ params["w_dec_t"] + params["b_dec"])
    return code, jnp.stack(outs, axis=1)


if __name__ == "__main__":
    batch, window, in_channels, code_dim = 2, 8, 4, 32

    key = jax.random.PRNGKey(0)
    k_x, k_p = jax.random.split(key)
    x = jax.random.normal(k_x, (batch, window, in_channels), jnp.float32)
    params = init_params(k_p, in_channels, code_dim)
    packed = pack_params(params, in_channels, code_dim)

    code_vec, out = jax.jit(tae_forward)(x, packed)
    code_vec = jax.block_until_ready(code_vec)
    out = jax.block_until_ready(out)

    assert code_vec.shape == (batch, code_dim)
    assert out.shape == (batch, window, in_channels)

    code_ref, out_ref = tae_reference(x, params)
    assert jnp.allclose(code_vec, code_ref, rtol=1e-3, atol=1e-3)
    assert jnp.allclose(out, out_ref, rtol=1e-3, atol=1e-3)

    print("KERNEL_OK")
</pallas_src>

<mosaic_0001>
module attributes {stable_mosaic.version = 11 : i64} {
  func.func @tae_kernel(%arg0: i32, %arg1: memref<8x8x8xf32, #tpu.memory_space<vmem>>, %arg2: memref<106x128xf32, #tpu.memory_space<vmem>>, %arg3: memref<33x4xf32, #tpu.memory_space<vmem>>, %arg4: memref<8x32xf32, #tpu.memory_space<vmem>>, %arg5: memref<8x8x4xf32, #tpu.memory_space<vmem>>, %arg6: memref<8x8x32xf32, #tpu.memory_space<vmem>>) attributes {dimension_semantics = [#tpu.dimension_semantics<parallel>], iteration_bounds = array<i64: 1>, scalar_prefetch = 0 : i64, scratch_operands = 1 : i64, tpu.core_type = #tpu.core_type<tc>, window_params = [{transform_indices = @transform_0, window_bounds = array<i64: 8, 8, 8>}, {pipeline_mode = #tpu.pipeline_mode<synchronous>, transform_indices = @transform_1, window_bounds = array<i64: 106, 128>}, {pipeline_mode = #tpu.pipeline_mode<synchronous>, transform_indices = @transform_2, window_bounds = array<i64: 33, 4>}, {transform_indices = @transform_3, window_bounds = array<i64: 8, 32>}, {transform_indices = @transform_4, window_bounds = array<i64: 8, 8, 4>}]} {
    %c0 = arith.constant 0 : index
    %c0_0 = arith.constant 0 : index
    %0 = vector.load %arg2[%c0, %c0_0] : memref<106x128xf32, #tpu.memory_space<vmem>>, vector<8x128xf32>
    %c8 = arith.constant 8 : index
    %c0_1 = arith.constant 0 : index
    %1 = vector.load %arg2[%c8, %c0_1] : memref<106x128xf32, #tpu.memory_space<vmem>>, vector<32x128xf32>
    %c40 = arith.constant 40 : index
    %c0_2 = arith.constant 0 : index
    %2 = vector.load %arg2[%c40, %c0_2] : memref<106x128xf32, #tpu.memory_space<vmem>>, vector<32x128xf32>
    %c72 = arith.constant 72 : index
    %c0_3 = arith.constant 0 : index
    %3 = vector.load %arg2[%c72, %c0_3] : memref<106x128xf32, #tpu.memory_space<vmem>>, vector<32x128xf32>
    %c104 = arith.constant 104 : index
    %c0_4 = arith.constant 0 : index
    %4 = vector.load %arg2[%c104, %c0_4] : memref<106x128xf32, #tpu.memory_space<vmem>>, vector<1x128xf32>
    %c105 = arith.constant 105 : index
    %c0_5 = arith.constant 0 : index
    %5 = vector.load %arg2[%c105, %c0_5] : memref<106x128xf32, #tpu.memory_space<vmem>>, vector<1x128xf32>
    %c0_6 = arith.constant 0 : index
    %c0_7 = arith.constant 0 : index
    %c0_8 = arith.constant 0 : index
    %6 = vector.load %arg1[%c0_6, %c0_7, %c0_8] : memref<8x8x8xf32, #tpu.memory_space<vmem>>, vector<8x8x8xf32>
    %7 = vector.shape_cast %6 : vector<8x8x8xf32> to vector<64x8xf32>
    %cst = arith.constant dense<0.000000e+00> : vector<64x128xf32>
    %8 = tpu.matmul %7, %0, %cst {dimension_numbers = #tpu.dot_dimension_numbers<[1], [0], [0], [1], [0, 0, 1, 1], [], []>} : vector<64x8xf32>, vector<8x128xf32>, vector<64x128xf32> -> vector<64x128xf32>
    %9 = vector.broadcast %4 : vector<1x128xf32> to vector<64x128xf32>
    %10 = arith.addf %8, %9 : vector<64x128xf32>
    %11 = vector.shape_cast %10 : vector<64x128xf32> to vector<8x8x128xf32>
    %cst_9 = arith.constant 0.000000e+00 : f32
    %12 = vector.broadcast %cst_9 : f32 to vector<8x32xf32>
    %13 = vector.extract_strided_slice %11 {offsets = [0, 0, 0], sizes = [1, 8, 128], strides = [1, 1, 1]} : vector<8x8x128xf32> to vector<1x8x128xf32>
    %14 = vector.shape_cast %13 : vector<1x8x128xf32> to vector<8x128xf32>
    %15 = arith.negf %14 : vector<8x128xf32>
    %16 = math.exp %15 : vector<8x128xf32>
    %cst_10 = arith.constant 1.000000e+00 : f32
    %17 = vector.broadcast %cst_10 : f32 to vector<8x128xf32>
    %18 = arith.addf %17, %16 : vector<8x128xf32>
    %19 = arith.divf %17, %18 : vector<8x128xf32>
    %20 = math.tanh %14 : vector<8x128xf32>
    %21 = vector.extract_strided_slice %19 {offsets = [0, 0], sizes = [8, 32], strides = [1, 1]} : vector<8x128xf32> to vector<8x32xf32>
    %22 = vector.extract_strided_slice %19 {offsets = [0, 32], sizes = [8, 32], strides = [1, 1]} : vector<8x128xf32> to vector<8x32xf32>
    %23 = vector.extract_strided_slice %20 {offsets = [0, 64], sizes = [8, 32], strides = [1, 1]} : vector<8x128xf32> to vector<8x32xf32>
    %24 = vector.extract_strided_slice %19 {offsets = [0, 96], sizes = [8, 32], strides = [1, 1]} : vector<8x128xf32> to vector<8x32xf32>
    %25 = arith.mulf %22, %12 : vector<8x32xf32>
    %26 = arith.mulf %21, %23 : vector<8x32xf32>
    %27 = arith.addf %25, %26 : vector<8x32xf32>
    %28 = math.tanh %27 : vector<8x32xf32>
    %29 = arith.mulf %24, %28 : vector<8x32xf32>
    %30 = vector.extract_strided_slice %11 {offsets = [1, 0, 0], sizes = [1, 8, 128], strides = [1, 1, 1]} : vector<8x8x128xf32> to vector<1x8x128xf32>
    %31 = vector.shape_cast %30 : vector<1x8x128xf32> to vector<8x128xf32>
    %cst_11 = arith.constant dense<0.000000e+00> : vector<8x128xf32>
    %32 = tpu.matmul %29, %1, %cst_11 {dimension_numbers = #tpu.dot_dimension_numbers<[1], [0], [0], [1], [0, 0, 1, 1], [], []>} : vector<8x32xf32>, vector<32x128xf32>, vector<8x128xf32> -> vector<8x128xf32>
    %33 = arith.addf %31, %32 : vector<8x128xf32>
    %34 = arith.negf %33 : vector<8x128xf32>
    %35 = math.exp %34 : vector<8x128xf32>
    %cst_12 = arith.constant 1.000000e+00 : f32
    %36 = vector.broadcast %cst_12 : f32 to vector<8x128xf32>
    %37 = arith.addf %36, %35 : vector<8x128xf32>
    %38 = arith.divf %36, %37 : vector<8x128xf32>
    %39 = math.tanh %33 : vector<8x128xf32>
    %40 = vector.extract_strided_slice %38 {offsets = [0, 0], sizes = [8, 32], strides = [1, 1]} : vector<8x128xf32> to vector<8x32xf32>
    %41 = vector.extract_strided_slice %38 {offsets = [0, 32], sizes = [8, 32], strides = [1, 1]} : vector<8x128xf32> to vector<8x32xf32>
    %42 = vector.extract_strided_slice %39 {offsets = [0, 64], sizes = [8, 32], strides = [1, 1]} : vector<8x128xf32> to vector<8x32xf32>
    %43 = vector.extract_strided_slice %38 {offsets = [0, 96], sizes = [8, 32], strides = [1, 1]} : vector<8x128xf32> to vector<8x32xf32>
    %44 = arith.mulf %41, %27 : vector<8x32xf32>
    %45 = arith.mulf %40, %42 : vector<8x32xf32>
    %46 = arith.addf %44, %45 : vector<8x32xf32>
    %47 = math.tanh %46 : vector<8x32xf32>
    %48 = arith.mulf %43, %47 : vector<8x32xf32>
    %49 = vector.extract_strided_slice %11 {offsets = [2, 0, 0], sizes = [1, 8, 128], strides = [1, 1, 1]} : vector<8x8x128xf32> to vector<1x8x128xf32>
    %50 = vector.shape_cast %49 : vector<1x8x128xf32> to vector<8x128xf32>
    %cst_13 = arith.constant dense<0.000000e+00> : vector<8x128xf32>
    %51 = tpu.matmul %48, %1, %cst_13 {dimension_numbers = #tpu.dot_dimension_numbers<[1], [0], [0], [1], [0, 0, 1, 1], [], []>} : vector<8x32xf32>, vector<32x128xf32>, vector<8x128xf32> -> vector<8x128xf32>
    %52 = arith.addf %50, %51 : vector<8x128xf32>
    %53 = arith.negf %52 : vector<8x128xf32>
    %54 = math.exp %53 : vector<8x128xf32>
    %cst_14 = arith.constant 1.000000e+00 : f32
    %55 = vector.broadcast %cst_14 : f32 to vector<8x128xf32>
    %56 = arith.addf %55, %54 : vector<8x128xf32>
    %57 = arith.divf %55, %56 : vector<8x128xf32>
    %58 = math.tanh %52 : vector<8x128xf32>
    %59 = vector.extract_strided_slice %57 {offsets = [0, 0], sizes = [8, 32], strides = [1, 1]} : vector<8x128xf32> to vector<8x32xf32>
    %60 = vector.extract_strided_slice %57 {offsets = [0, 32], sizes = [8, 32], strides = [1, 1]} : vector<8x128xf32> to vector<8x32xf32>
    %61 = vector.extract_strided_slice %58 {offsets = [0, 64], sizes = [8, 32], strides = [1, 1]} : vector<8x128xf32> to vector<8x32xf32>
    %62 = vector.extract_strided_slice %57 {offsets = [0, 96], sizes = [8, 32], strides = [1, 1]} : vector<8x128xf32> to vector<8x32xf32>
    %63 = arith.mulf %60, %46 : vector<8x32xf32>
    %64 = arith.mulf %59, %61 : vector<8x32xf32>
    %65 = arith.addf %63, %64 : vector<8x32xf32>
    %66 = math.tanh %65 : vector<8x32xf32>
    %67 = arith.mulf %62, %66 : vector<8x32xf32>
    %68 = vector.extract_strided_slice %11 {offsets = [3, 0, 0], sizes = [1, 8, 128], strides = [1, 1, 1]} : vector<8x8x128xf32> to vector<1x8x128xf32>
    %69 = vector.shape_cast %68 : vector<1x8x128xf32> to vector<8x128xf32>
    %cst_15 = arith.constant dense<0.000000e+00> : vector<8x128xf32>
    %70 = tpu.matmul %67, %1, %cst_15 {dimension_numbers = #tpu.dot_dimension_numbers<[1], [0], [0], [1], [0, 0, 1, 1], [], []>} : vector<8x32xf32>, vector<32x128xf32>, vector<8x128xf32> -> vector<8x128xf32>
    %71 = arith.addf %69, %70 : vector<8x128xf32>
    %72 = arith.negf %71 : vector<8x128xf32>
    %73 = math.exp %72 : vector<8x128xf32>
    %cst_16 = arith.constant 1.000000e+00 : f32
    %74 = vector.broadcast %cst_16 : f32 to vector<8x128xf32>
    %75 = arith.addf %74, %73 : vector<8x128xf32>
    %76 = arith.divf %74, %75 : vector<8x128xf32>
    %77 = math.tanh %71 : vector<8x128xf32>
    %78 = vector.extract_strided_slice %76 {offsets = [0, 0], sizes = [8, 32], strides = [1, 1]} : vector<8x128xf32> to vector<8x32xf32>
    %79 = vector.extract_strided_slice %76 {offsets = [0, 32], sizes = [8, 32], strides = [1, 1]} : vector<8x128xf32> to vector<8x32xf32>
    %80 = vector.extract_strided_slice %77 {offsets = [0, 64], sizes = [8, 32], strides = [1, 1]} : vector<8x128xf32> to vector<8x32xf32>
    %81 = vector.extract_strided_slice %76 {offsets = [0, 96], sizes = [8, 32], strides = [1, 1]} : vector<8x128xf32> to vector<8x32xf32>
    %82 = arith.mulf %79, %65 : vector<8x32xf32>
    %83 = arith.mulf %78, %80 : vector<8x32xf32>
    %84 = arith.addf %82, %83 : vector<8x32xf32>
    %85 = math.tanh %84 : vector<8x32xf32>
    %86 = arith.mulf %81, %85 : vector<8x32xf32>
    %87 = vector.extract_strided_slice %11 {offsets = [4, 0, 0], sizes = [1, 8, 128], strides = [1, 1, 1]} : vector<8x8x128xf32> to vector<1x8x128xf32>
    %88 = vector.shape_cast %87 : vector<1x8x128xf32> to vector<8x128xf32>
    %cst_17 = arith.constant dense<0.000000e+00> : vector<8x128xf32>
    %89 = tpu.matmul %86, %1, %cst_17 {dimension_numbers = #tpu.dot_dimension_numbers<[1], [0], [0], [1], [0, 0, 1, 1], [], []>} : vector<8x32xf32>, vector<32x128xf32>, vector<8x128xf32> -> vector<8x128xf32>
    %90 = arith.addf %88, %89 : vector<8x128xf32>
    %91 = arith.negf %90 : vector<8x128xf32>
    %92 = math.exp %91 : vector<8x128xf32>
    %cst_18 = arith.constant 1.000000e+00 : f32
    %93 = vector.broadcast %cst_18 : f32 to vector<8x128xf32>
    %94 = arith.addf %93, %92 : vector<8x128xf32>
    %95 = arith.divf %93, %94 : vector<8x128xf32>
    %96 = math.tanh %90 : vector<8x128xf32>
    %97 = vector.extract_strided_slice %95 {offsets = [0, 0], sizes = [8, 32], strides = [1, 1]} : vector<8x128xf32> to vector<8x32xf32>
    %98 = vector.extract_strided_slice %95 {offsets = [0, 32], sizes = [8, 32], strides = [1, 1]} : vector<8x128xf32> to vector<8x32xf32>
    %99 = vector.extract_strided_slice %96 {offsets = [0, 64], sizes = [8, 32], strides = [1, 1]} : vector<8x128xf32> to vector<8x32xf32>
    %100 = vector.extract_strided_slice %95 {offsets = [0, 96], sizes = [8, 32], strides = [1, 1]} : vector<8x128xf32> to vector<8x32xf32>
    %101 = arith.mulf %98, %84 : vector<8x32xf32>
    %102 = arith.mulf %97, %99 : vector<8x32xf32>
    %103 = arith.addf %101, %102 : vector<8x32xf32>
    %104 = math.tanh %103 : vector<8x32xf32>
    %105 = arith.mulf %100, %104 : vector<8x32xf32>
    %106 = vector.extract_strided_slice %11 {offsets = [5, 0, 0], sizes = [1, 8, 128], strides = [1, 1, 1]} : vector<8x8x128xf32> to vector<1x8x128xf32>
    %107 = vector.shape_cast %106 : vector<1x8x128xf32> to vector<8x128xf32>
    %cst_19 = arith.constant dense<0.000000e+00> : vector<8x128xf32>
    %108 = tpu.matmul %105, %1, %cst_19 {dimension_numbers = #tpu.dot_dimension_numbers<[1], [0], [0], [1], [0, 0, 1, 1], [], []>} : vector<8x32xf32>, vector<32x128xf32>, vector<8x128xf32> -> vector<8x128xf32>
    %109 = arith.addf %107, %108 : vector<8x128xf32>
    %110 = arith.negf %109 : vector<8x128xf32>
    %111 = math.exp %110 : vector<8x128xf32>
    %cst_20 = arith.constant 1.000000e+00 : f32
    %112 = vector.broadcast %cst_20 : f32 to vector<8x128xf32>
    %113 = arith.addf %112, %111 : vector<8x128xf32>
    %114 = arith.divf %112, %113 : vector<8x128xf32>
    %115 = math.tanh %109 : vector<8x128xf32>
    %116 = vector.extract_strided_slice %114 {offsets = [0, 0], sizes = [8, 32], strides = [1, 1]} : vector<8x128xf32> to vector<8x32xf32>
    %117 = vector.extract_strided_slice %114 {offsets = [0, 32], sizes = [8, 32], strides = [1, 1]} : vector<8x128xf32> to vector<8x32xf32>
    %118 = vector.extract_strided_slice %115 {offsets = [0, 64], sizes = [8, 32], strides = [1, 1]} : vector<8x128xf32> to vector<8x32xf32>
    %119 = vector.extract_strided_slice %114 {offsets = [0, 96], sizes = [8, 32], strides = [1, 1]} : vector<8x128xf32> to vector<8x32xf32>
    %120 = arith.mulf %117, %103 : vector<8x32xf32>
    %121 = arith.mulf %116, %118 : vector<8x32xf32>
    %122 = arith.addf %120, %121 : vector<8x32xf32>
    %123 = math.tanh %122 : vector<8x32xf32>
    %124 = arith.mulf %119, %123 : vector<8x32xf32>
    %125 = vector.extract_strided_slice %11 {offsets = [6, 0, 0], sizes = [1, 8, 128], strides = [1, 1, 1]} : vector<8x8x128xf32> to vector<1x8x128xf32>
    %126 = vector.shape_cast %125 : vector<1x8x128xf32> to vector<8x128xf32>
    %cst_21 = arith.constant dense<0.000000e+00> : vector<8x128xf32>
    %127 = tpu.matmul %124, %1, %cst_21 {dimension_numbers = #tpu.dot_dimension_numbers<[1], [0], [0], [1], [0, 0, 1, 1], [], []>} : vector<8x32xf32>, vector<32x128xf32>, vector<8x128xf32> -> vector<8x128xf32>
    %128 = arith.addf %126, %127 : vector<8x128xf32>
    %129 = arith.negf %128 : vector<8x128xf32>
    %130 = math.exp %129 : vector<8x128xf32>
    %cst_22 = arith.constant 1.000000e+00 : f32
    %131 = vector.broadcast %cst_22 : f32 to vector<8x128xf32>
    %132 = arith.addf %131, %130 : vector<8x128xf32>
    %133 = arith.divf %131, %132 : vector<8x128xf32>
    %134 = math.tanh %128 : vector<8x128xf32>
    %135 = vector.extract_strided_slice %133 {offsets = [0, 0], sizes = [8, 32], strides = [1, 1]} : vector<8x128xf32> to vector<8x32xf32>
    %136 = vector.extract_strided_slice %133 {offsets = [0, 32], sizes = [8, 32], strides = [1, 1]} : vector<8x128xf32> to vector<8x32xf32>
    %137 = vector.extract_strided_slice %134 {offsets = [0, 64], sizes = [8, 32], strides = [1, 1]} : vector<8x128xf32> to vector<8x32xf32>
    %138 = vector.extract_strided_slice %133 {offsets = [0, 96], sizes = [8, 32], strides = [1, 1]} : vector<8x128xf32> to vector<8x32xf32>
    %139 = arith.mulf %136, %122 : vector<8x32xf32>
    %140 = arith.mulf %135, %137 : vector<8x32xf32>
    %141 = arith.addf %139, %140 : vector<8x32xf32>
    %142 = math.tanh %141 : vector<8x32xf32>
    %143 = arith.mulf %138, %142 : vector<8x32xf32>
    %144 = vector.extract_strided_slice %11 {offsets = [7, 0, 0], sizes = [1, 8, 128], strides = [1, 1, 1]} : vector<8x8x128xf32> to vector<1x8x128xf32>
    %145 = vector.shape_cast %144 : vector<1x8x128xf32> to vector<8x128xf32>
    %cst_23 = arith.constant dense<0.000000e+00> : vector<8x128xf32>
    %146 = tpu.matmul %143, %1, %cst_23 {dimension_numbers = #tpu.dot_dimension_numbers<[1], [0], [0], [1], [0, 0, 1, 1], [], []>} : vector<8x32xf32>, vector<32x128xf32>, vector<8x128xf32> -> vector<8x128xf32>
    %147 = arith.addf %145, %146 : vector<8x128xf32>
    %148 = arith.negf %147 : vector<8x128xf32>
    %149 = math.exp %148 : vector<8x128xf32>
    %cst_24 = arith.constant 1.000000e+00 : f32
    %150 = vector.broadcast %cst_24 : f32 to vector<8x128xf32>
    %151 = arith.addf %150, %149 : vector<8x128xf32>
    %152 = arith.divf %150, %151 : vector<8x128xf32>
    %153 = math.tanh %147 : vector<8x128xf32>
    %154 = vector.extract_strided_slice %152 {offsets = [0, 0], sizes = [8, 32], strides = [1, 1]} : vector<8x128xf32> to vector<8x32xf32>
    %155 = vector.extract_strided_slice %152 {offsets = [0, 32], sizes = [8, 32], strides = [1, 1]} : vector<8x128xf32> to vector<8x32xf32>
    %156 = vector.extract_strided_slice %153 {offsets = [0, 64], sizes = [8, 32], strides = [1, 1]} : vector<8x128xf32> to vector<8x32xf32>
    %157 = vector.extract_strided_slice %152 {offsets = [0, 96], sizes = [8, 32], strides = [1, 1]} : vector<8x128xf32> to vector<8x32xf32>
    %158 = arith.mulf %155, %141 : vector<8x32xf32>
    %159 = arith.mulf %154, %156 : vector<8x32xf32>
    %160 = arith.addf %158, %159 : vector<8x32xf32>
    %161 = math.tanh %160 : vector<8x32xf32>
    %162 = arith.mulf %157, %161 : vector<8x32xf32>
    %c0_25 = arith.constant 0 : index
    %c0_26 = arith.constant 0 : index
    %163 = vector.load %arg4[%c0_25, %c0_26] : memref<8x32xf32, #tpu.memory_space<vmem>>, vector<8x32xf32>
    tpu.vector_store %arg4[%c0_25, %c0_26], %162 {strides = array<i32>} : memref<8x32xf32, #tpu.memory_space<vmem>>, vector<8x32xf32>,
    %164 = vector.shape_cast %5 : vector<1x128xf32> to vector<1x128xf32>
    %165 = vector.broadcast %164 : vector<1x128xf32> to vector<8x128xf32>
    %cst_27 = arith.constant dense<0.000000e+00> : vector<8x128xf32>
    %166 = tpu.matmul %162, %2, %cst_27 {dimension_numbers = #tpu.dot_dimension_numbers<[1], [0], [0], [1], [0, 0, 1, 1], [], []>} : vector<8x32xf32>, vector<32x128xf32>, vector<8x128xf32> -> vector<8x128xf32>
    %167 = arith.addf %166, %165 : vector<8x128xf32>
    %168 = arith.negf %167 : vector<8x128xf32>
    %169 = math.exp %168 : vector<8x128xf32>
    %cst_28 = arith.constant 1.000000e+00 : f32
    %170 = vector.broadcast %cst_28 : f32 to vector<8x128xf32>
    %171 = arith.addf %170, %169 : vector<8x128xf32>
    %172 = arith.divf %170, %171 : vector<8x128xf32>
    %173 = math.tanh %167 : vector<8x128xf32>
    %174 = vector.extract_strided_slice %172 {offsets = [0, 0], sizes = [8, 32], strides = [1, 1]} : vector<8x128xf32> to vector<8x32xf32>
    %175 = vector.extract_strided_slice %172 {offsets = [0, 32], sizes = [8, 32], strides = [1, 1]} : vector<8x128xf32> to vector<8x32xf32>
    %176 = vector.extract_strided_slice %173 {offsets = [0, 64], sizes = [8, 32], strides = [1, 1]} : vector<8x128xf32> to vector<8x32xf32>
    %177 = vector.extract_strided_slice %172 {offsets = [0, 96], sizes = [8, 32], strides = [1, 1]} : vector<8x128xf32> to vector<8x32xf32>
    %178 = arith.mulf %175, %160 : vector<8x32xf32>
    %179 = arith.mulf %174, %176 : vector<8x32xf32>
    %180 = arith.addf %178, %179 : vector<8x32xf32>
    %181 = math.tanh %180 : vector<8x32xf32>
    %182 = arith.mulf %177, %181 : vector<8x32xf32>
    %c0_29 = arith.constant 0 : index
    %c0_30 = arith.constant 0 : index
    %c0_31 = arith.constant 0 : index
    %183 = vector.load %arg6[%c0_29, %c0_30, %c0_31] : memref<8x8x32xf32, #tpu.memory_space<vmem>>, vector<1x8x32xf32>
    %184 = vector.shape_cast %183 : vector<1x8x32xf32> to vector<8x32xf32>
    %185 = vector.shape_cast %182 : vector<8x32xf32> to vector<1x8x32xf32>
    tpu.vector_store %arg6[%c0_29, %c0_30, %c0_31], %185 {strides = array<i32>} : memref<8x8x32xf32, #tpu.memory_space<vmem>>, vector<1x8x32xf32>,
    %cst_32 = arith.constant dense<0.000000e+00> : vector<8x128xf32>
    %186 = tpu.matmul %182, %3, %cst_32 {dimension_numbers = #tpu.dot_dimension_numbers<[1], [0], [0], [1], [0, 0, 1, 1], [], []>} : vector<8x32xf32>, vector<32x128xf32>, vector<8x128xf32> -> vector<8x128xf32>
    %187 = arith.addf %186, %165 : vector<8x128xf32>
    %188 = arith.negf %187 : vector<8x128xf32>
    %189 = math.exp %188 : vector<8x128xf32>
    %cst_33 = arith.constant 1.000000e+00 : f32
    %190 = vector.broadcast %cst_33 : f32 to vector<8x128xf32>
    %191 = arith.addf %190, %189 : vector<8x128xf32>
    %192 = arith.divf %190, %191 : vector<8x128xf32>
    %193 = math.tanh %187 : vector<8x128xf32>
    %194 = vector.extract_strided_slice %192 {offsets = [0, 0], sizes = [8, 32], strides = [1, 1]} : vector<8x128xf32> to vector<8x32xf32>
    %195 = vector.extract_strided_slice %192 {offsets = [0, 32], sizes = [8, 32], strides = [1, 1]} : vector<8x128xf32> to vector<8x32xf32>
    %196 = vector.extract_strided_slice %193 {offsets = [0, 64], sizes = [8, 32], strides = [1, 1]} : vector<8x128xf32> to vector<8x32xf32>
    %197 = vector.extract_strided_slice %192 {offsets = [0, 96], sizes = [8, 32], strides = [1, 1]} : vector<8x128xf32> to vector<8x32xf32>
    %198 = arith.mulf %195, %180 : vector<8x32xf32>
    %199 = arith.mulf %194, %196 : vector<8x32xf32>
    %200 = arith.addf %198, %199 : vector<8x32xf32>
    %201 = math.tanh %200 : vector<8x32xf32>
    %202 = arith.mulf %197, %201 : vector<8x32xf32>
    %c1 = arith.constant 1 : index
    %c0_34 = arith.constant 0 : index
    %c0_35 = arith.constant 0 : index
    %203 = vector.load %arg6[%c1, %c0_34, %c0_35] : memref<8x8x32xf32, #tpu.memory_space<vmem>>, vector<1x8x32xf32>
    %204 = vector.shape_cast %203 : vector<1x8x32xf32> to vector<8x32xf32>
    %205 = vector.shape_cast %202 : vector<8x32xf32> to vector<1x8x32xf32>
    tpu.vector_store %arg6[%c1, %c0_34, %c0_35], %205 {strides = array<i32>} : memref<8x8x32xf32, #tpu.memory_space<vmem>>, vector<1x8x32xf32>,
    %cst_36 = arith.constant dense<0.000000e+00> : vector<8x128xf32>
    %206 = tpu.matmul %202, %3, %cst_36 {dimension_numbers = #tpu.dot_dimension_numbers<[1], [0], [0], [1], [0, 0, 1, 1], [], []>} : vector<8x32xf32>, vector<32x128xf32>, vector<8x128xf32> -> vector<8x128xf32>
    %207 = arith.addf %206, %165 : vector<8x128xf32>
    %208 = arith.negf %207 : vector<8x128xf32>
    %209 = math.exp %208 : vector<8x128xf32>
    %cst_37 = arith.constant 1.000000e+00 : f32
    %210 = vector.broadcast %cst_37 : f32 to vector<8x128xf32>
    %211 = arith.addf %210, %209 : vector<8x128xf32>
    %212 = arith.divf %210, %211 : vector<8x128xf32>
    %213 = math.tanh %207 : vector<8x128xf32>
    %214 = vector.extract_strided_slice %212 {offsets = [0, 0], sizes = [8, 32], strides = [1, 1]} : vector<8x128xf32> to vector<8x32xf32>
    %215 = vector.extract_strided_slice %212 {offsets = [0, 32], sizes = [8, 32], strides = [1, 1]} : vector<8x128xf32> to vector<8x32xf32>
    %216 = vector.extract_strided_slice %213 {offsets = [0, 64], sizes = [8, 32], strides = [1, 1]} : vector<8x128xf32> to vector<8x32xf32>
    %217 = vector.extract_strided_slice %212 {offsets = [0, 96], sizes = [8, 32], strides = [1, 1]} : vector<8x128xf32> to vector<8x32xf32>
    %218 = arith.mulf %215, %200 : vector<8x32xf32>
    %219 = arith.mulf %214, %216 : vector<8x32xf32>
    %220 = arith.addf %218, %219 : vector<8x32xf32>
    %221 = math.tanh %220 : vector<8x32xf32>
    %222 = arith.mulf %217, %221 : vector<8x32xf32>
    %c2 = arith.constant 2 : index
    %c0_38 = arith.constant 0 : index
    %c0_39 = arith.constant 0 : index
    %223 = vector.load %arg6[%c2, %c0_38, %c0_39] : memref<8x8x32xf32, #tpu.memory_space<vmem>>, vector<1x8x32xf32>
    %224 = vector.shape_cast %223 : vector<1x8x32xf32> to vector<8x32xf32>
    %225 = vector.shape_cast %222 : vector<8x32xf32> to vector<1x8x32xf32>
    tpu.vector_store %arg6[%c2, %c0_38, %c0_39], %225 {strides = array<i32>} : memref<8x8x32xf32, #tpu.memory_space<vmem>>, vector<1x8x32xf32>,
    %cst_40 = arith.constant dense<0.000000e+00> : vector<8x128xf32>
    %226 = tpu.matmul %222, %3, %cst_40 {dimension_numbers = #tpu.dot_dimension_numbers<[1], [0], [0], [1], [0, 0, 1, 1], [], []>} : vector<8x32xf32>, vector<32x128xf32>, vector<8x128xf32> -> vector<8x128xf32>
    %227 = arith.addf %226, %165 : vector<8x128xf32>
    %228 = arith.negf %227 : vector<8x128xf32>
    %229 = math.exp %228 : vector<8x128xf32>
    %cst_41 = arith.constant 1.000000e+00 : f32
    %230 = vector.broadcast %cst_41 : f32 to vector<8x128xf32>
    %231 = arith.addf %230, %229 : vector<8x128xf32>
    %232 = arith.divf %230, %231 : vector<8x128xf32>
    %233 = math.tanh %227 : vector<8x128xf32>
    %234 = vector.extract_strided_slice %232 {offsets = [0, 0], sizes = [8, 32], strides = [1, 1]} : vector<8x128xf32> to vector<8x32xf32>
    %235 = vector.extract_strided_slice %232 {offsets = [0, 32], sizes = [8, 32], strides = [1, 1]} : vector<8x128xf32> to vector<8x32xf32>
    %236 = vector.extract_strided_slice %233 {offsets = [0, 64], sizes = [8, 32], strides = [1, 1]} : vector<8x128xf32> to vector<8x32xf32>
    %237 = vector.extract_strided_slice %232 {offsets = [0, 96], sizes = [8, 32], strides = [1, 1]} : vector<8x128xf32> to vector<8x32xf32>
    %238 = arith.mulf %235, %220 : vector<8x32xf32>
    %239 = arith.mulf %234, %236 : vector<8x32xf32>
    %240 = arith.addf %238, %239 : vector<8x32xf32>
    %241 = math.tanh %240 : vector<8x32xf32>
    %242 = arith.mulf %237, %241 : vector<8x32xf32>
    %c3 = arith.constant 3 : index
    %c0_42 = arith.constant 0 : index
    %c0_43 = arith.constant 0 : index
    %243 = vector.load %arg6[%c3, %c0_42, %c0_43] : memref<8x8x32xf32, #tpu.memory_space<vmem>>, vector<1x8x32xf32>
    %244 = vector.shape_cast %243 : vector<1x8x32xf32> to vector<8x32xf32>
    %245 = vector.shape_cast %242 : vector<8x32xf32> to vector<1x8x32xf32>
    tpu.vector_store %arg6[%c3, %c0_42, %c0_43], %245 {strides = array<i32>} : memref<8x8x32xf32, #tpu.memory_space<vmem>>, vector<1x8x32xf32>,
    %cst_44 = arith.constant dense<0.000000e+00> : vector<8x128xf32>
    %246 = tpu.matmul %242, %3, %cst_44 {dimension_numbers = #tpu.dot_dimension_numbers<[1], [0], [0], [1], [0, 0, 1, 1], [], []>} : vector<8x32xf32>, vector<32x128xf32>, vector<8x128xf32> -> vector<8x128xf32>
    %247 = arith.addf %246, %165 : vector<8x128xf32>
    %248 = arith.negf %247 : vector<8x128xf32>
    %249 = math.exp %248 : vector<8x128xf32>
    %cst_45 = arith.constant 1.000000e+00 : f32
    %250 = vector.broadcast %cst_45 : f32 to vector<8x128xf32>
    %251 = arith.addf %250, %249 : vector<8x128xf32>
    %252 = arith.divf %250, %251 : vector<8x128xf32>
    %253 = math.tanh %247 : vector<8x128xf32>
    %254 = vector.extract_strided_slice %252 {offsets = [0, 0], sizes = [8, 32], strides = [1, 1]} : vector<8x128xf32> to vector<8x32xf32>
    %255 = vector.extract_strided_slice %252 {offsets = [0, 32], sizes = [8, 32], strides = [1, 1]} : vector<8x128xf32> to vector<8x32xf32>
    %256 = vector.extract_strided_slice %253 {offsets = [0, 64], sizes = [8, 32], strides = [1, 1]} : vector<8x128xf32> to vector<8x32xf32>
    %257 = vector.extract_strided_slice %252 {offsets = [0, 96], sizes = [8, 32], strides = [1, 1]} : vector<8x128xf32> to vector<8x32xf32>
    %258 = arith.mulf %255, %240 : vector<8x32xf32>
    %259 = arith.mulf %254, %256 : vector<8x32xf32>
    %260 = arith.addf %258, %259 : vector<8x32xf32>
    %261 = math.tanh %260 : vector<8x32xf32>
    %262 = arith.mulf %257, %261 : vector<8x32xf32>
    %c4 = arith.constant 4 : index
    %c0_46 = arith.constant 0 : index
    %c0_47 = arith.constant 0 : index
    %263 = vector.load %arg6[%c4, %c0_46, %c0_47] : memref<8x8x32xf32, #tpu.memory_space<vmem>>, vector<1x8x32xf32>
    %264 = vector.shape_cast %263 : vector<1x8x32xf32> to vector<8x32xf32>
    %265 = vector.shape_cast %262 : vector<8x32xf32> to vector<1x8x32xf32>
    tpu.vector_store %arg6[%c4, %c0_46, %c0_47], %265 {strides = array<i32>} : memref<8x8x32xf32, #tpu.memory_space<vmem>>, vector<1x8x32xf32>,
    %cst_48 = arith.constant dense<0.000000e+00> : vector<8x128xf32>
    %266 = tpu.matmul %262, %3, %cst_48 {dimension_numbers = #tpu.dot_dimension_numbers<[1], [0], [0], [1], [0, 0, 1, 1], [], []>} : vector<8x32xf32>, vector<32x128xf32>, vector<8x128xf32> -> vector<8x128xf32>
    %267 = arith.addf %266, %165 : vector<8x128xf32>
    %268 = arith.negf %267 : vector<8x128xf32>
    %269 = math.exp %268 : vector<8x128xf32>
    %cst_49 = arith.constant 1.000000e+00 : f32
    %270 = vector.broadcast %cst_49 : f32 to vector<8x128xf32>
    %271 = arith.addf %270, %269 : vector<8x128xf32>
    %272 = arith.divf %270, %271 : vector<8x128xf32>
    %273 = math.tanh %267 : vector<8x128xf32>
    %274 = vector.extract_strided_slice %272 {offsets = [0, 0], sizes = [8, 32], strides = [1, 1]} : vector<8x128xf32> to vector<8x32xf32>
    %275 = vector.extract_strided_slice %272 {offsets = [0, 32], sizes = [8, 32], strides = [1, 1]} : vector<8x128xf32> to vector<8x32xf32>
    %276 = vector.extract_strided_slice %273 {offsets = [0, 64], sizes = [8, 32], strides = [1, 1]} : vector<8x128xf32> to vector<8x32xf32>
    %277 = vector.extract_strided_slice %272 {offsets = [0, 96], sizes = [8, 32], strides = [1, 1]} : vector<8x128xf32> to vector<8x32xf32>
    %278 = arith.mulf %275, %260 : vector<8x32xf32>
    %279 = arith.mulf %274, %276 : vector<8x32xf32>
    %280 = arith.addf %278, %279 : vector<8x32xf32>
    %281 = math.tanh %280 : vector<8x32xf32>
    %282 = arith.mulf %277, %281 : vector<8x32xf32>
    %c5 = arith.constant 5 : index
    %c0_50 = arith.constant 0 : index
    %c0_51 = arith.constant 0 : index
    %283 = vector.load %arg6[%c5, %c0_50, %c0_51] : memref<8x8x32xf32, #tpu.memory_space<vmem>>, vector<1x8x32xf32>
    %284 = vector.shape_cast %283 : vector<1x8x32xf32> to vector<8x32xf32>
    %285 = vector.shape_cast %282 : vector<8x32xf32> to vector<1x8x32xf32>
    tpu.vector_store %arg6[%c5, %c0_50, %c0_51], %285 {strides = array<i32>} : memref<8x8x32xf32, #tpu.memory_space<vmem>>, vector<1x8x32xf32>,
    %cst_52 = arith.constant dense<0.000000e+00> : vector<8x128xf32>
    %286 = tpu.matmul %282, %3, %cst_52 {dimension_numbers = #tpu.dot_dimension_numbers<[1], [0], [0], [1], [0, 0, 1, 1], [], []>} : vector<8x32xf32>, vector<32x128xf32>, vector<8x128xf32> -> vector<8x128xf32>
    %287 = arith.addf %286, %165 : vector<8x128xf32>
    %288 = arith.negf %287 : vector<8x128xf32>
    %289 = math.exp %288 : vector<8x128xf32>
    %cst_53 = arith.constant 1.000000e+00 : f32
    %290 = vector.broadcast %cst_53 : f32 to vector<8x128xf32>
    %291 = arith.addf %290, %289 : vector<8x128xf32>
    %292 = arith.divf %290, %291 : vector<8x128xf32>
    %293 = math.tanh %287 : vector<8x128xf32>
    %294 = vector.extract_strided_slice %292 {offsets = [0, 0], sizes = [8, 32], strides = [1, 1]} : vector<8x128xf32> to vector<8x32xf32>
    %295 = vector.extract_strided_slice %292 {offsets = [0, 32], sizes = [8, 32], strides = [1, 1]} : vector<8x128xf32> to vector<8x32xf32>
    %296 = vector.extract_strided_slice %293 {offsets = [0, 64], sizes = [8, 32], strides = [1, 1]} : vector<8x128xf32> to vector<8x32xf32>
    %297 = vector.extract_strided_slice %292 {offsets = [0, 96], sizes = [8, 32], strides = [1, 1]} : vector<8x128xf32> to vector<8x32xf32>
    %298 = arith.mulf %295, %280 : vector<8x32xf32>
    %299 = arith.mulf %294, %296 : vector<8x32xf32>
    %300 = arith.addf %298, %299 : vector<8x32xf32>
    %301 = math.tanh %300 : vector<8x32xf32>
    %302 = arith.mulf %297, %301 : vector<8x32xf32>
    %c6 = arith.constant 6 : index
    %c0_54 = arith.constant 0 : index
    %c0_55 = arith.constant 0 : index
    %303 = vector.load %arg6[%c6, %c0_54, %c0_55] : memref<8x8x32xf32, #tpu.memory_space<vmem>>, vector<1x8x32xf32>
    %304 = vector.shape_cast %303 : vector<1x8x32xf32> to vector<8x32xf32>
    %305 = vector.shape_cast %302 : vector<8x32xf32> to vector<1x8x32xf32>
    tpu.vector_store %arg6[%c6, %c0_54, %c0_55], %305 {strides = array<i32>} : memref<8x8x32xf32, #tpu.memory_space<vmem>>, vector<1x8x32xf32>,
    %cst_56 = arith.constant dense<0.000000e+00> : vector<8x128xf32>
    %306 = tpu.matmul %302, %3, %cst_56 {dimension_numbers = #tpu.dot_dimension_numbers<[1], [0], [0], [1], [0, 0, 1, 1], [], []>} : vector<8x32xf32>, vector<32x128xf32>, vector<8x128xf32> -> vector<8x128xf32>
    %307 = arith.addf %306, %165 : vector<8x128xf32>
    %308 = arith.negf %307 : vector<8x128xf32>
    %309 = math.exp %308 : vector<8x128xf32>
    %cst_57 = arith.constant 1.000000e+00 : f32
    %310 = vector.broadcast %cst_57 : f32 to vector<8x128xf32>
    %311 = arith.addf %310, %309 : vector<8x128xf32>
    %312 = arith.divf %310, %311 : vector<8x128xf32>
    %313 = math.tanh %307 : vector<8x128xf32>
    %314 = vector.extract_strided_slice %312 {offsets = [0, 0], sizes = [8, 32], strides = [1, 1]} : vector<8x128xf32> to vector<8x32xf32>
    %315 = vector.extract_strided_slice %312 {offsets = [0, 32], sizes = [8, 32], strides = [1, 1]} : vector<8x128xf32> to vector<8x32xf32>
    %316 = vector.extract_strided_slice %313 {offsets = [0, 64], sizes = [8, 32], strides = [1, 1]} : vector<8x128xf32> to vector<8x32xf32>
    %317 = vector.extract_strided_slice %312 {offsets = [0, 96], sizes = [8, 32], strides = [1, 1]} : vector<8x128xf32> to vector<8x32xf32>
    %318 = arith.mulf %315, %300 : vector<8x32xf32>
    %319 = arith.mulf %314, %316 : vector<8x32xf32>
    %320 = arith.addf %318, %319 : vector<8x32xf32>
    %321 = math.tanh %320 : vector<8x32xf32>
    %322 = arith.mulf %317, %321 : vector<8x32xf32>
    %c7 = arith.constant 7 : index
    %c0_58 = arith.constant 0 : index
    %c0_59 = arith.constant 0 : index
    %323 = vector.load %arg6[%c7, %c0_58, %c0_59] : memref<8x8x32xf32, #tpu.memory_space<vmem>>, vector<1x8x32xf32>
    %324 = vector.shape_cast %323 : vector<1x8x32xf32> to vector<8x32xf32>
    %325 = vector.shape_cast %322 : vector<8x32xf32> to vector<1x8x32xf32>
    tpu.vector_store %arg6[%c7, %c0_58, %c0_59], %325 {strides = array<i32>} : memref<8x8x32xf32, #tpu.memory_space<vmem>>, vector<1x8x32xf32>,
    %c0_60 = arith.constant 0 : index
    %c0_61 = arith.constant 0 : index
    %326 = vector.load %arg3[%c0_60, %c0_61] : memref<33x4xf32, #tpu.memory_space<vmem>>, vector<32x4xf32>
    %c32 = arith.constant 32 : index
    %c0_62 = arith.constant 0 : index
    %327 = vector.load %arg3[%c32, %c0_62] : memref<33x4xf32, #tpu.memory_space<vmem>>, vector<1x4xf32>
    %c0_63 = arith.constant 0 : index
    %c0_64 = arith.constant 0 : index
    %c0_65 = arith.constant 0 : index
    %328 = vector.load %arg6[%c0_63, %c0_64, %c0_65] : memref<8x8x32xf32, #tpu.memory_space<vmem>>, vector<8x8x32xf32>
    %329 = vector.shape_cast %328 : vector<8x8x32xf32> to vector<64x32xf32>
    %cst_66 = arith.constant dense<0.000000e+00> : vector<64x4xf32>
    %330 = tpu.matmul %329, %326, %cst_66 {dimension_numbers = #tpu.dot_dimension_numbers<[1], [0], [0], [1], [0, 0, 1, 1], [], []>} : vector<64x32xf32>, vector<32x4xf32>, vector<64x4xf32> -> vector<64x4xf32>
    %331 = vector.broadcast %327 : vector<1x4xf32> to vector<64x4xf32>
    %332 = arith.addf %330, %331 : vector<64x4xf32>
    %333 = vector.shape_cast %332 : vector<64x4xf32> to vector<8x8x4xf32>
    %c0_67 = arith.constant 0 : index
    %c0_68 = arith.constant 0 : index
    %c0_69 = arith.constant 0 : index
    %334 = vector.load %arg5[%c0_67, %c0_68, %c0_69] : memref<8x8x4xf32, #tpu.memory_space<vmem>>, vector<8x8x4xf32>
    tpu.vector_store %arg5[%c0_67, %c0_68, %c0_69], %333 {strides = array<i32>} : memref<8x8x4xf32, #tpu.memory_space<vmem>>, vector<8x8x4xf32>,
    return
  }
  func.func @transform_0(%arg0: i32) -> (i32, i32, i32) {
    %c0_i32 = arith.constant 0 : i32
    %c0_i32_0 = arith.constant 0 : i32
    %c0_i32_1 = arith.constant 0 : i32
    return %c0_i32, %arg0, %c0_i32_0 : i32, i32, i32
  }
  func.func @transform_1(%arg0: i32) -> (i32, i32) {
    %c0_i32 = arith.constant 0 : i32
    %c0_i32_0 = arith.constant 0 : i32
    %c0_i32_1 = arith.constant 0 : i32
    return %c0_i32, %c0_i32_0 : i32, i32
  }
  func.func @transform_2(%arg0: i32) -> (i32, i32) {
    %c0_i32 = arith.constant 0 : i32
    %c0_i32_0 = arith.constant 0 : i32
    %c0_i32_1 = arith.constant 0 : i32
    return %c0_i32, %c0_i32_0 : i32, i32
  }
  func.func @transform_3(%arg0: i32) -> (i32, i32) {
    %c0_i32 = arith.constant 0 : i32
    %c0_i32_0 = arith.constant 0 : i32
    return %arg0, %c0_i32 : i32, i32
  }
  func.func @transform_4(%arg0: i32) -> (i32, i32, i32) {
    %c0_i32 = arith.constant 0 : i32
    %c0_i32_0 = arith.constant 0 : i32
    %c0_i32_1 = arith.constant 0 : i32
    return %c0_i32, %arg0, %c0_i32_0 : i32, i32, i32
  }
}

</mosaic_0001>

<llo_original>
// kernel: tae_forward.1
$region0: #{tae_forward.1}
  #allocation0 [shape = 'u32[]', space=smem, size = 0x4, offset = 0x4, fixed_abs, tag = 'smem constant byte address 0x4 - core index']
  #allocation1 [shape = 'u32[144,128]{1,0:T(1,128)}', space=vmem, size = 0x12000, scoped, tag = 'internal scratch']
  #allocation2 [shape = 'f32[8,8,32]{2,1,0:T(8,128)}', space=vmem, size = 0x8000, scoped, tag = 'scratch operand']
  %s0 = inlined_call_operand.vmem [shape: f32[8,8,8], index: 0, kind: input, shape index: {}]
  %s1 = inlined_call_operand.vmem [shape: f32[106,128], index: 1, kind: input, shape index: {}]
  %s2 = inlined_call_operand.vmem [shape: f32[33,4], index: 2, kind: input, shape index: {}]
  %s3 = inlined_call_operand.vmem [shape: f32[8,32], index: 3, kind: output, shape index: {0}]
  %s4 = inlined_call_operand.vmem [shape: f32[8,8,4], index: 4, kind: output, shape index: {1}]
  %5 = xla_tuple %s3, %s4
  %s6 = sld [smem:[#allocation0]]
  $region30: #{tae_forward.1} parent=0
    _
  %s8 = ssub.s32 1, %s6
  %s9 = scalar_select 0, %s8, %s6
  // Predicated region
  $region2: #{tae_forward.1} parent=0 // pred_check
    _
  $region3: #{tae_forward.1} parent=0 // pred_check_branch
    %11 = sbr.rel (0) target = $region5
  $region4: #{tae_forward.1} parent=0 // pred_region
    _
  $region5: #{tae_forward.1} parent=0 // pred_fallthru
    _
  // Predicated region
  $region6: #{tae_forward.1} parent=0 // pred_check
    _
  $region7: #{tae_forward.1} parent=0 // pred_check_branch
    %13 = sbr.rel (0) target = $region9
  $region8: #{tae_forward.1} parent=0 // pred_region
    _
  $region9: #{tae_forward.1} parent=0 // pred_fallthru
    _
  // Predicated region
  $region10: #{tae_forward.1} parent=0 // pred_check
    _
  $region11: #{tae_forward.1} parent=0 // pred_check_branch
    %15 = sbr.rel (0) target = $region13
  $region12: #{tae_forward.1} parent=0 // pred_region
    _
  $region13: #{tae_forward.1} parent=0 // pred_fallthru
    _
  %v16 = vld [vmem:[%s1] sm:$0xff]
  %v17 = vld [vmem:[%s1 + $0x8] sm:$0xff]
  %v18 = vld [vmem:[%s1 + $0x10] sm:$0xff]
  %v19 = vld [vmem:[%s1 + $0x18] sm:$0xff]
  %v20 = vld [vmem:[%s1 + $0x20] sm:$0xff]
  %v21 = vld [vmem:[%s1 + $0x28] sm:$0xff]
  %v22 = vld [vmem:[%s1 + $0x30] sm:$0xff]
  %v23 = vld [vmem:[%s1 + $0x38] sm:$0xff]
  %v24 = vld [vmem:[%s1 + $0x40] sm:$0xff]
  %v25 = vld [vmem:[%s1 + $0x48] sm:$0xff]
  %v26 = vld [vmem:[%s1 + $0x50] sm:$0xff]
  %v27 = vld [vmem:[%s1 + $0x58] sm:$0xff]
  %v28 = vld [vmem:[%s1 + $0x60] sm:$0xff]
  %v29 = vld [vmem:[%s1 + $0x68] sm:$0x1]
  %v30 = vld [vmem:[%s1 + $0x69] sm:$0x1]
  %v31 = vld [vmem:[%s0] sm:$0xff]
  %v32 = vld [vmem:[%s0 + $0x8] sm:$0xff]
  %v33 = vld [vmem:[%s0 + $0x10] sm:$0xff]
  %v34 = vld [vmem:[%s0 + $0x18] sm:$0xff]
  %v35 = vld [vmem:[%s0 + $0x20] sm:$0xff]
  %v36 = vld [vmem:[%s0 + $0x28] sm:$0xff]
  %v37 = vld [vmem:[%s0 + $0x30] sm:$0xff]
  %v38 = vld [vmem:[%s0 + $0x38] sm:$0xff]
  %v39 = vlaneseq
  %v40 = vshrl.u32 %v39, 7
  %v41 = vsub.s32 0, %v40
  %v42 = vrot.slane %v29, %v41
  %vm43 = vcmask 64512
  %v45 = vsel %vm43, %v31, 0
  %v48 = vsel %vm43, %v32, 0
  %v51 = vsel %vm43, %v33, 0
  %v54 = vsel %vm43, %v34, 0
  %v57 = vsel %vm43, %v35, 0
  %v60 = vsel %vm43, %v36, 0
  %v63 = vsel %vm43, %v37, 0
  %v66 = vsel %vm43, %v38, 0
  %68 = vmatprep.subr.mxu0 0.0
  %69 = vmatpush1.msra.mxu0 %v16
  %70 = vmatprep.subr.mxu0 0.0
  %71 = vmatpush1.msra.mxu0 0.0
  %72 = vmatprep.subr.mxu0 0.0
  %73 = vmatpush1.msra.mxu0 0.0
  %74 = vmatprep.subr.mxu0 0.0
  %75 = vmatpush1.msra.mxu0 0.0
  %76 = vmatprep.subr.mxu0 0.0
  %77 = vmatpush1.msra.mxu0 0.0
  %78 = vmatprep.subr.mxu0 0.0
  %79 = vmatpush1.msra.mxu0 0.0
  %80 = vmatprep.subr.mxu0 0.0
  %81 = vmatpush1.msra.mxu0 0.0
  %82 = vmatprep.subr.mxu0 0.0
  %83 = vmatpush1.msra.mxu0 0.0
  %84 = vmatprep.subr.mxu0 0.0
  %85 = vmatpush1.msra.mxu0 0.0
  %86 = vmatprep.subr.mxu0 0.0
  %87 = vmatpush1.msra.mxu0 0.0
  %88 = vmatprep.subr.mxu0 0.0
  %89 = vmatpush1.msra.mxu0 0.0
  %90 = vmatprep.subr.mxu0 0.0
  %91 = vmatpush1.msra.mxu0 0.0
  %92 = vmatprep.subr.mxu0 0.0
  %93 = vmatpush1.msra.mxu0 0.0
  %94 = vmatprep.subr.mxu0 0.0
  %95 = vmatpush1.msra.mxu0 0.0
  %96 = vmatprep.subr.mxu0 0.0
  %97 = vmatpush1.msra.mxu0 0.0
  %98 = vmatprep.subr.mxu0 0.0
  %99 = vmatpush1.msra.mxu0 0.0
  %100 = vmatprep.subr.mxu0 0.0
  %101 = vmatpush1.msra.mxu0 0.0
  %102 = vmatprep.subr.mxu0 0.0
  %103 = vmatpush1.msra.mxu0 0.0
  %104 = vmatprep.subr.mxu0 0.0
  %105 = vmatpush1.msra.mxu0 0.0
  %106 = vmatprep.subr.mxu0 0.0
  %107 = vmatpush1.msra.mxu0 0.0
  %108 = vmatprep.subr.mxu0 0.0
  %109 = vmatpush1.msra.mxu0 0.0
  %110 = vmatprep.subr.mxu0 0.0
  %111 = vmatpush1.msra.mxu0 0.0
  %112 = vmatprep.subr.mxu0 0.0
  %113 = vmatpush1.msra.mxu0 0.0
  %114 = vmatprep.subr.mxu0 0.0
  %115 = vmatpush1.msra.mxu0 0.0
  %116 = vmatprep.subr.mxu0 0.0
  %117 = vmatpush1.msra.mxu0 0.0
  %118 = vmatprep.subr.mxu0 0.0
  %119 = vmatpush1.msra.mxu0 0.0
  %120 = vmatprep.subr.mxu0 0.0
  %121 = vmatpush1.msra.mxu0 0.0
  %122 = vmatprep.subr.mxu0 0.0
  %123 = vmatpush1.msra.mxu0 0.0
  %124 = vmatprep.subr.mxu0 0.0
  %125 = vmatpush1.msra.mxu0 0.0
  %126 = vmatprep.subr.mxu0 0.0
  %127 = vmatpush1.msra.mxu0 0.0
  %128 = vmatprep.subr.mxu0 0.0
  %129 = vmatpush1.msra.mxu0 0.0
  %130 = vmatprep.subr.mxu0 0.0
  %131 = vmatpush1.msra.mxu0 0.0
  %132 = vmatprep.mubr.f32.mxu0 0.0
  %133 = vmatmul.mubr.f32.gmra.mrb[0].mxu0 %v45
  %v134 = vpop.f32.mrb[0].mxu0
  %v135 = vadd.f32 %v42, %v134
  %v136 = vpop.f32.mrb[0].mxu0
  %137 = vmatprep.mubr.f32.mxu0 0.0
  %138 = vmatmul.mubr.f32.gmra.mrb[0].mxu0 %v48
  %v139 = vpop.f32.mrb[0].mxu0
  %v140 = vadd.f32 %v42, %v139
  %v141 = vpop.f32.mrb[0].mxu0
  %142 = vmatprep.mubr.f32.mxu0 0.0
  %143 = vmatmul.mubr.f32.gmra.mrb[0].mxu0 %v51
  %v144 = vpop.f32.mrb[0].mxu0
  %v145 = vadd.f32 %v42, %v144
  %v146 = vpop.f32.mrb[0].mxu0
  %147 = vmatprep.mubr.f32.mxu0 0.0
  %148 = vmatmul.mubr.f32.gmra.mrb[0].mxu0 %v54
  %v149 = vpop.f32.mrb[0].mxu0
  %v150 = vadd.f32 %v42, %v149
  %v151 = vpop.f32.mrb[0].mxu0
  %152 = vmatprep.mubr.f32.mxu0 0.0
  %153 = vmatmul.mubr.f32.gmra.mrb[0].mxu0 %v57
  %v154 = vpop.f32.mrb[0].mxu0
  %v155 = vadd.f32 %v42, %v154
  %v156 = vpop.f32.mrb[0].mxu0
  %157 = vmatprep.mubr.f32.mxu0 0.0
  %158 = vmatmul.mubr.f32.gmra.mrb[0].mxu0 %v60
  %v159 = vpop.f32.mrb[0].mxu0
  %v160 = vadd.f32 %v42, %v159
  %v161 = vpop.f32.mrb[0].mxu0
  %162 = vmatprep.mubr.f32.mxu0 0.0
  %163 = vmatmul.mubr.f32.gmra.mrb[0].mxu0 %v63
  %v164 = vpop.f32.mrb[0].mxu0
  %v165 = vadd.f32 %v42, %v164
  %v166 = vpop.f32.mrb[0].mxu0
  %167 = vmatprep.mubr.f32.mxu0 0.0
  %168 = vmatmul.mubr.f32.gmra.mrb[0].mxu0 %v66
  %v169 = vpop.f32.mrb[0].mxu0
  %v170 = vadd.f32 %v42, %v169
  %v171 = vpop.f32.mrb[0].mxu0
  %172 = vdwg.mxu0
  %v173 = vxor.u32 %v135, 2147483648
  %v174 = vmul.f32 %v173, 1.442695
  %v175 = vpow.pop %v174
  %v176 = vadd.f32 %v175, 1.0
  %v177 = vrcp.pop %v176
  %v178 = vmul.f32 1.0, %v177
  %v179 = vtanh.pop %v135
  %v180 = vmul.f32 %v178, 0.0
  %182 = vrot.lane.b32.xlu0 %v179, 64
  %v183 = vpop.permute.xlu0 %182
  %v185 = vmul.f32 %v178, %v183
  %187 = vrot.lane.b32.xlu0 %v185, 32
  %v188 = vpop.permute.xlu0 %187
  %v190 = vadd.f32 %v180, %v188
  %v191 = vtanh.pop %v190
  %193 = vrot.lane.b32.xlu0 %v191, 64
  %v194 = vpop.permute.xlu0 %193
  %v196 = vmul.f32 %v178, %v194
  %198 = vrot.lane.b32.xlu0 %v196, 32
  %v199 = vpop.permute.xlu0 %198
  %vm200 = vcmask 261120
  %v201 = vsel %vm200, %v199, 0
  %203 = vmatprep.subr.mxu0 0.0
  %204 = vmatpush1.msra.mxu0 %v17
  %205 = vmatprep.subr.mxu0 0.0
  %206 = vmatpush1.msra.mxu0 %v18
  %207 = vmatprep.subr.mxu0 0.0
  %208 = vmatpush1.msra.mxu0 %v19
  %209 = vmatprep.subr.mxu0 0.0
  %210 = vmatpush1.msra.mxu0 %v20
  %211 = vmatprep.subr.mxu0 0.0
  %212 = vmatpush1.msra.mxu0 0.0
  %213 = vmatprep.subr.mxu0 0.0
  %214 = vmatpush1.msra.mxu0 0.0
  %215 = vmatprep.subr.mxu0 0.0
  %216 = vmatpush1.msra.mxu0 0.0
  %217 = vmatprep.subr.mxu0 0.0
  %218 = vmatpush1.msra.mxu0 0.0
  %219 = vmatprep.subr.mxu0 0.0
  %220 = vmatpush1.msra.mxu0 0.0
  %221 = vmatprep.subr.mxu0 0.0
  %222 = vmatpush1.msra.mxu0 0.0
  %223 = vmatprep.subr.mxu0 0.0
  %224 = vmatpush1.msra.mxu0 0.0
  %225 = vmatprep.subr.mxu0 0.0
  %226 = vmatpush1.msra.mxu0 0.0
  %227 = vmatprep.subr.mxu0 0.0
  %228 = vmatpush1.msra.mxu0 0.0
  %229 = vmatprep.subr.mxu0 0.0
  %230 = vmatpush1.msra.mxu0 0.0
  %231 = vmatprep.subr.mxu0 0.0
  %232 = vmatpush1.msra.mxu0 0.0
  %233 = vmatprep.subr.mxu0 0.0
  %234 = vmatpush1.msra.mxu0 0.0
  %235 = vmatprep.subr.mxu0 0.0
  %236 = vmatpush1.msra.mxu0 0.0
  %237 = vmatprep.subr.mxu0 0.0
  %238 = vmatpush1.msra.mxu0 0.0
  %239 = vmatprep.subr.mxu0 0.0
  %240 = vmatpush1.msra.mxu0 0.0
  %241 = vmatprep.subr.mxu0 0.0
  %242 = vmatpush1.msra.mxu0 0.0
  %243 = vmatprep.subr.mxu0 0.0
  %244 = vmatpush1.msra.mxu0 0.0
  %245 = vmatprep.subr.mxu0 0.0
  %246 = vmatpush1.msra.mxu0 0.0
  %247 = vmatprep.subr.mxu0 0.0
  %248 = vmatpush1.msra.mxu0 0.0
  %249 = vmatprep.subr.mxu0 0.0
  %250 = vmatpush1.msra.mxu0 0.0
  %251 = vmatprep.subr.mxu0 0.0
  %252 = vmatpush1.msra.mxu0 0.0
  %253 = vmatprep.subr.mxu0 0.0
  %254 = vmatpush1.msra.mxu0 0.0
  %255 = vmatprep.subr.mxu0 0.0
  %256 = vmatpush1.msra.mxu0 0.0
  %257 = vmatprep.subr.mxu0 0.0
  %258 = vmatpush1.msra.mxu0 0.0
  %259 = vmatprep.subr.mxu0 0.0
  %260 = vmatpush1.msra.mxu0 0.0
  %261 = vmatprep.subr.mxu0 0.0
  %262 = vmatpush1.msra.mxu0 0.0
  %263 = vmatprep.subr.mxu0 0.0
  %264 = vmatpush1.msra.mxu0 0.0
  %265 = vmatprep.subr.mxu0 0.0
  %266 = vmatpush1.msra.mxu0 0.0
  %267 = vmatprep.mubr.f32.mxu0 0.0
  %268 = vmatmul.mubr.f32.gmra.mrb[0].mxu0 %v201
  %v269 = vpop.f32.mrb[0].mxu0
  %v270 = vadd.f32 0.0, %v269
  %v271 = vpop.f32.mrb[0].mxu0
  %272 = vdwg.mxu0
  %v273 = vadd.f32 %v140, %v270
  %v274 = vxor.u32 %v273, 2147483648
  %v275 = vmul.f32 %v274, 1.442695
  %v276 = vpow.pop %v275
  %v277 = vadd.f32 %v276, 1.0
  %v278 = vrcp.pop %v277
  %v279 = vmul.f32 1.0, %v278
  %v280 = vtanh.pop %v273
  %v281 = vmul.f32 %v279, %v190
  %283 = vrot.lane.b32.xlu0 %v280, 64
  %v284 = vpop.permute.xlu0 %283
  %v286 = vmul.f32 %v279, %v284
  %288 = vrot.lane.b32.xlu0 %v286, 32
  %v289 = vpop.permute.xlu0 %288
  %v291 = vadd.f32 %v281, %v289
  %v292 = vtanh.pop %v291
  %294 = vrot.lane.b32.xlu0 %v292, 64
  %v295 = vpop.permute.xlu0 %294
  %v297 = vmul.f32 %v279, %v295
  %299 = vrot.lane.b32.xlu0 %v297, 32
  %v300 = vpop.permute.xlu0 %299
  %v301 = vsel %vm200, %v300, 0
  %303 = vmatprep.subr.mxu0 0.0
  %304 = vmatpush1.msra.mxu0 %v17
  %305 = vmatprep.subr.mxu0 0.0
  %306 = vmatpush1.msra.mxu0 %v18
  %307 = vmatprep.subr.mxu0 0.0
  %308 = vmatpush1.msra.mxu0 %v19
  %309 = vmatprep.subr.mxu0 0.0
  %310 = vmatpush1.msra.mxu0 %v20
  %311 = vmatprep.subr.mxu0 0.0
  %312 = vmatpush1.msra.mxu0 0.0
  %313 = vmatprep.subr.mxu0 0.0
  %314 = vmatpush1.msra.mxu0 0.0
  %315 = vmatprep.subr.mxu0 0.0
  %316 = vmatpush1.msra.mxu0 0.0
  %317 = vmatprep.subr.mxu0 0.0
  %318 = vmatpush1.msra.mxu0 0.0
  %319 = vmatprep.subr.mxu0 0.0
  %320 = vmatpush1.msra.mxu0 0.0
  %321 = vmatprep.subr.mxu0 0.0
  %322 = vmatpush1.msra.mxu0 0.0
  %323 = vmatprep.subr.mxu0 0.0
  %324 = vmatpush1.msra.mxu0 0.0
  %325 = vmatprep.subr.mxu0 0.0
  %326 = vmatpush1.msra.mxu0 0.0
  %327 = vmatprep.subr.mxu0 0.0
  %328 = vmatpush1.msra.mxu0 0.0
  %329 = vmatprep.subr.mxu0 0.0
  %330 = vmatpush1.msra.mxu0 0.0
  %331 = vmatprep.subr.mxu0 0.0
  %332 = vmatpush1.msra.mxu0 0.0
  %333 = vmatprep.subr.mxu0 0.0
  %334 = vmatpush1.msra.mxu0 0.0
  %335 = vmatprep.subr.mxu0 0.0
  %336 = vmatpush1.msra.mxu0 0.0
  %337 = vmatprep.subr.mxu0 0.0
  %338 = vmatpush1.msra.mxu0 0.0
  %339 = vmatprep.subr.mxu0 0.0
  %340 = vmatpush1.msra.mxu0 0.0
  %341 = vmatprep.subr.mxu0 0.0
  %342 = vmatpush1.msra.mxu0 0.0
  %343 = vmatprep.subr.mxu0 0.0
  %344 = vmatpush1.msra.mxu0 0.0
  %345 = vmatprep.subr.mxu0 0.0
  %346 = vmatpush1.msra.mxu0 0.0
  %347 = vmatprep.subr.mxu0 0.0
  %348 = vmatpush1.msra.mxu0 0.0
  %349 = vmatprep.subr.mxu0 0.0
  %350 = vmatpush1.msra.mxu0 0.0
  %351 = vmatprep.subr.mxu0 0.0
  %352 = vmatpush1.msra.mxu0 0.0
  %353 = vmatprep.subr.mxu0 0.0
  %354 = vmatpush1.msra.mxu0 0.0
  %355 = vmatprep.subr.mxu0 0.0
  %356 = vmatpush1.msra.mxu0 0.0
  %357 = vmatprep.subr.mxu0 0.0
  %358 = vmatpush1.msra.mxu0 0.0
  %359 = vmatprep.subr.mxu0 0.0
  %360 = vmatpush1.msra.mxu0 0.0
  %361 = vmatprep.subr.mxu0 0.0
  %362 = vmatpush1.msra.mxu0 0.0
  %363 = vmatprep.subr.mxu0 0.0
  %364 = vmatpush1.msra.mxu0 0.0
  %365 = vmatprep.subr.mxu0 0.0
  %366 = vmatpush1.msra.mxu0 0.0
  %367 = vmatprep.mubr.f32.mxu0 0.0
  %368 = vmatmul.mubr.f32.gmra.mrb[0].mxu0 %v301
  %v369 = vpop.f32.mrb[0].mxu0
  %v370 = vadd.f32 0.0, %v369
  %v371 = vpop.f32.mrb[0].mxu0
  %372 = vdwg.mxu0
  %v373 = vadd.f32 %v145, %v370
  %v374 = vxor.u32 %v373, 2147483648
  %v375 = vmul.f32 %v374, 1.442695
  %v376 = vpow.pop %v375
  %v377 = vadd.f32 %v376, 1.0
  %v378 = vrcp.pop %v377
  %v379 = vmul.f32 1.0, %v378
  %v380 = vtanh.pop %v373
  %v381 = vmul.f32 %v379, %v291
  %383 = vrot.lane.b32.xlu0 %v380, 64
  %v384 = vpop.permute.xlu0 %383
  %v386 = vmul.f32 %v379, %v384
  %388 = vrot.lane.b32.xlu0 %v386, 32
  %v389 = vpop.permute.xlu0 %388
  %v391 = vadd.f32 %v381, %v389
  %v392 = vtanh.pop %v391
  %394 = vrot.lane.b32.xlu0 %v392, 64
  %v395 = vpop.permute.xlu0 %394
  %v397 = vmul.f32 %v379, %v395
  %399 = vrot.lane.b32.xlu0 %v397, 32
  %v400 = vpop.permute.xlu0 %399
  %v401 = vsel %vm200, %v400, 0
  %403 = vmatprep.subr.mxu0 0.0
  %404 = vmatpush1.msra.mxu0 %v17
  %405 = vmatprep.subr.mxu0 0.0
  %406 = vmatpush1.msra.mxu0 %v18
  %407 = vmatprep.subr.mxu0 0.0
  %408 = vmatpush1.msra.mxu0 %v19
  %409 = vmatprep.subr.mxu0 0.0
  %410 = vmatpush1.msra.mxu0 %v20
  %411 = vmatprep.subr.mxu0 0.0
  %412 = vmatpush1.msra.mxu0 0.0
  %413 = vmatprep.subr.mxu0 0.0
  %414 = vmatpush1.msra.mxu0 0.0
  %415 = vmatprep.subr.mxu0 0.0
  %416 = vmatpush1.msra.mxu0 0.0
  %417 = vmatprep.subr.mxu0 0.0
  %418 = vmatpush1.msra.mxu0 0.0
  %419 = vmatprep.subr.mxu0 0.0
  %420 = vmatpush1.msra.mxu0 0.0
  %421 = vmatprep.subr.mxu0 0.0
  %422 = vmatpush1.msra.mxu0 0.0
  %423 = vmatprep.subr.mxu0 0.0
  %424 = vmatpush1.msra.mxu0 0.0
  %425 = vmatprep.subr.mxu0 0.0
  %426 = vmatpush1.msra.mxu0 0.0
  %427 = vmatprep.subr.mxu0 0.0
  %428 = vmatpush1.msra.mxu0 0.0
  %429 = vmatprep.subr.mxu0 0.0
  %430 = vmatpush1.msra.mxu0 0.0
  %431 = vmatprep.subr.mxu0 0.0
  %432 = vmatpush1.msra.mxu0 0.0
  %433 = vmatprep.subr.mxu0 0.0
  %434 = vmatpush1.msra.mxu0 0.0
  %435 = vmatprep.subr.mxu0 0.0
  %436 = vmatpush1.msra.mxu0 0.0
  %437 = vmatprep.subr.mxu0 0.0
  %438 = vmatpush1.msra.mxu0 0.0
  %439 = vmatprep.subr.mxu0 0.0
  %440 = vmatpush1.msra.mxu0 0.0
  %441 = vmatprep.subr.mxu0 0.0
  %442 = vmatpush1.msra.mxu0 0.0
  %443 = vmatprep.subr.mxu0 0.0
  %444 = vmatpush1.msra.mxu0 0.0
  %445 = vmatprep.subr.mxu0 0.0
  %446 = vmatpush1.msra.mxu0 0.0
  %447 = vmatprep.subr.mxu0 0.0
  %448 = vmatpush1.msra.mxu0 0.0
  %449 = vmatprep.subr.mxu0 0.0
  %450 = vmatpush1.msra.mxu0 0.0
  %451 = vmatprep.subr.mxu0 0.0
  %452 = vmatpush1.msra.mxu0 0.0
  %453 = vmatprep.subr.mxu0 0.0
  %454 = vmatpush1.msra.mxu0 0.0
  %455 = vmatprep.subr.mxu0 0.0
  %456 = vmatpush1.msra.mxu0 0.0
  %457 = vmatprep.subr.mxu0 0.0
  %458 = vmatpush1.msra.mxu0 0.0
  %459 = vmatprep.subr.mxu0 0.0
  %460 = vmatpush1.msra.mxu0 0.0
  %461 = vmatprep.subr.mxu0 0.0
  %462 = vmatpush1.msra.mxu0 0.0
  %463 = vmatprep.subr.mxu0 0.0
  %464 = vmatpush1.msra.mxu0 0.0
  %465 = vmatprep.subr.mxu0 0.0
  %466 = vmatpush1.msra.mxu0 0.0
  %467 = vmatprep.mubr.f32.mxu0 0.0
  %468 = vmatmul.mubr.f32.gmra.mrb[0].mxu0 %v401
  %v469 = vpop.f32.mrb[0].mxu0
  %v470 = vadd.f32 0.0, %v469
  %v471 = vpop.f32.mrb[0].mxu0
  %472 = vdwg.mxu0
  %v473 = vadd.f32 %v150, %v470
  %v474 = vxor.u32 %v473, 2147483648
  %v475 = vmul.f32 %v474, 1.442695
  %v476 = vpow.pop %v475
  %v477 = vadd.f32 %v476, 1.0
  %v478 = vrcp.pop %v477
  %v479 = vmul.f32 1.0, %v478
  %v480 = vtanh.pop %v473
  %v481 = vmul.f32 %v479, %v391
  %483 = vrot.lane.b32.xlu0 %v480, 64
  %v484 = vpop.permute.xlu0 %483
  %v486 = vmul.f32 %v479, %v484
  %488 = vrot.lane.b32.xlu0 %v486, 32
  %v489 = vpop.permute.xlu0 %488
  %v491 = vadd.f32 %v481, %v489
  %v492 = vtanh.pop %v491
  %494 = vrot.lane.b32.xlu0 %v492, 64
  %v495 = vpop.permute.xlu0 %494
  %v497 = vmul.f32 %v479, %v495
  %499 = vrot.lane.b32.xlu0 %v497, 32
  %v500 = vpop.permute.xlu0 %499
  %v501 = vsel %vm200, %v500, 0
  %503 = vmatprep.subr.mxu0 0.0
  %504 = vmatpush1.msra.mxu0 %v17
  %505 = vmatprep.subr.mxu0 0.0
  %506 = vmatpush1.msra.mxu0 %v18
  %507 = vmatprep.subr.mxu0 0.0
  %508 = vmatpush1.msra.mxu0 %v19
  %509 = vmatprep.subr.mxu0 0.0
  %510 = vmatpush1.msra.mxu0 %v20
  %511 = vmatprep.subr.mxu0 0.0
  %512 = vmatpush1.msra.mxu0 0.0
  %513 = vmatprep.subr.mxu0 0.0
  %514 = vmatpush1.msra.mxu0 0.0
  %515 = vmatprep.subr.mxu0 0.0
  %516 = vmatpush1.msra.mxu0 0.0
  %517 = vmatprep.subr.mxu0 0.0
  %518 = vmatpush1.msra.mxu0 0.0
  %519 = vmatprep.subr.mxu0 0.0
  %520 = vmatpush1.msra.mxu0 0.0
  %521 = vmatprep.subr.mxu0 0.0
  %522 = vmatpush1.msra.mxu0 0.0
  %523 = vmatprep.subr.mxu0 0.0
  %524 = vmatpush1.msra.mxu0 0.0
  %525 = vmatprep.subr.mxu0 0.0
  %526 = vmatpush1.msra.mxu0 0.0
  %527 = vmatprep.subr.mxu0 0.0
  %528 = vmatpush1.msra.mxu0 0.0
  %529 = vmatprep.subr.mxu0 0.0
  %530 = vmatpush1.msra.mxu0 0.0
  %531 = vmatprep.subr.mxu0 0.0
  %532 = vmatpush1.msra.mxu0 0.0
  %533 = vmatprep.subr.mxu0 0.0
  %534 = vmatpush1.msra.mxu0 0.0
  %535 = vmatprep.subr.mxu0 0.0
  %536 = vmatpush1.msra.mxu0 0.0
  %537 = vmatprep.subr.mxu0 0.0
  %538 = vmatpush1.msra.mxu0 0.0
  %539 = vmatprep.subr.mxu0 0.0
  %540 = vmatpush1.msra.mxu0 0.0
  %541 = vmatprep.subr.mxu0 0.0
  %542 = vmatpush1.msra.mxu0 0.0
  %543 = vmatprep.subr.mxu0 0.0
  %544 = vmatpush1.msra.mxu0 0.0
  %545 = vmatprep.subr.mxu0 0.0
  %546 = vmatpush1.msra.mxu0 0.0
  %547 = vmatprep.subr.mxu0 0.0
  %548 = vmatpush1.msra.mxu0 0.0
  %549 = vmatprep.subr.mxu0 0.0
  %550 = vmatpush1.msra.mxu0 0.0
  %551 = vmatprep.subr.mxu0 0.0
  %552 = vmatpush1.msra.mxu0 0.0
  %553 = vmatprep.subr.mxu0 0.0
  %554 = vmatpush1.msra.mxu0 0.0
  %555 = vmatprep.subr.mxu0 0.0
  %556 = vmatpush1.msra.mxu0 0.0
  %557 = vmatprep.subr.mxu0 0.0
  %558 = vmatpush1.msra.mxu0 0.0
  %559 = vmatprep.subr.mxu0 0.0
  %560 = vmatpush1.msra.mxu0 0.0
  %561 = vmatprep.subr.mxu0 0.0
  %562 = vmatpush1.msra.mxu0 0.0
  %563 = vmatprep.subr.mxu0 0.0
  %564 = vmatpush1.msra.mxu0 0.0
  %565 = vmatprep.subr.mxu0 0.0
  %566 = vmatpush1.msra.mxu0 0.0
  %567 = vmatprep.mubr.f32.mxu0 0.0
  %568 = vmatmul.mubr.f32.gmra.mrb[0].mxu0 %v501
  %v569 = vpop.f32.mrb[0].mxu0
  %v570 = vadd.f32 0.0, %v569
  %v571 = vpop.f32.mrb[0].mxu0
  %572 = vdwg.mxu0
  %v573 = vadd.f32 %v155, %v570
  %v574 = vxor.u32 %v573, 2147483648
  %v575 = vmul.f32 %v574, 1.442695
  %v576 = vpow.pop %v575
  %v577 = vadd.f32 %v576, 1.0
  %v578 = vrcp.pop %v577
  %v579 = vmul.f32 1.0, %v578
  %v580 = vtanh.pop %v573
  %v581 = vmul.f32 %v579, %v491
  %583 = vrot.lane.b32.xlu0 %v580, 64
  %v584 = vpop.permute.xlu0 %583
  %v586 = vmul.f32 %v579, %v584
  %588 = vrot.lane.b32.xlu0 %v586, 32
  %v589 = vpop.permute.xlu0 %588
  %v591 = vadd.f32 %v581, %v589
  %v592 = vtanh.pop %v591
  %594 = vrot.lane.b32.xlu0 %v592, 64
  %v595 = vpop.permute.xlu0 %594
  %v597 = vmul.f32 %v579, %v595
  %599 = vrot.lane.b32.xlu0 %v597, 32
  %v600 = vpop.permute.xlu0 %599
  %v601 = vsel %vm200, %v600, 0
  %603 = vmatprep.subr.mxu0 0.0
  %604 = vmatpush1.msra.mxu0 %v17
  %605 = vmatprep.subr.mxu0 0.0
  %606 = vmatpush1.msra.mxu0 %v18
  %607 = vmatprep.subr.mxu0 0.0
  %608 = vmatpush1.msra.mxu0 %v19
  %609 = vmatprep.subr.mxu0 0.0
  %610 = vmatpush1.msra.mxu0 %v20
  %611 = vmatprep.subr.mxu0 0.0
  %612 = vmatpush1.msra.mxu0 0.0
  %613 = vmatprep.subr.mxu0 0.0
  %614 = vmatpush1.msra.mxu0 0.0
  %615 = vmatprep.subr.mxu0 0.0
  %616 = vmatpush1.msra.mxu0 0.0
  %617 = vmatprep.subr.mxu0 0.0
  %618 = vmatpush1.msra.mxu0 0.0
  %619 = vmatprep.subr.mxu0 0.0
  %620 = vmatpush1.msra.mxu0 0.0
  %621 = vmatprep.subr.mxu0 0.0
  %622 = vmatpush1.msra.mxu0 0.0
  %623 = vmatprep.subr.mxu0 0.0
  %624 = vmatpush1.msra.mxu0 0.0
  %625 = vmatprep.subr.mxu0 0.0
  %626 = vmatpush1.msra.mxu0 0.0
  %627 = vmatprep.subr.mxu0 0.0
  %628 = vmatpush1.msra.mxu0 0.0
  %629 = vmatprep.subr.mxu0 0.0
  %630 = vmatpush1.msra.mxu0 0.0
  %631 = vmatprep.subr.mxu0 0.0
  %632 = vmatpush1.msra.mxu0 0.0
  %633 = vmatprep.subr.mxu0 0.0
  %634 = vmatpush1.msra.mxu0 0.0
  %635 = vmatprep.subr.mxu0 0.0
  %636 = vmatpush1.msra.mxu0 0.0
  %637 = vmatprep.subr.mxu0 0.0
  %638 = vmatpush1.msra.mxu0 0.0
  %639 = vmatprep.subr.mxu0 0.0
  %640 = vmatpush1.msra.mxu0 0.0
  %641 = vmatprep.subr.mxu0 0.0
  %642 = vmatpush1.msra.mxu0 0.0
  %643 = vmatprep.subr.mxu0 0.0
  %644 = vmatpush1.msra.mxu0 0.0
  %645 = vmatprep.subr.mxu0 0.0
  %646 = vmatpush1.msra.mxu0 0.0
  %647 = vmatprep.subr.mxu0 0.0
  %648 = vmatpush1.msra.mxu0 0.0
  %649 = vmatprep.subr.mxu0 0.0
  %650 = vmatpush1.msra.mxu0 0.0
  %651 = vmatprep.subr.mxu0 0.0
  %652 = vmatpush1.msra.mxu0 0.0
  %653 = vmatprep.subr.mxu0 0.0
  %654 = vmatpush1.msra.mxu0 0.0
  %655 = vmatprep.subr.mxu0 0.0
  %656 = vmatpush1.msra.mxu0 0.0
  %657 = vmatprep.subr.mxu0 0.0
  %658 = vmatpush1.msra.mxu0 0.0
  %659 = vmatprep.subr.mxu0 0.0
  %660 = vmatpush1.msra.mxu0 0.0
  %661 = vmatprep.subr.mxu0 0.0
  %662 = vmatpush1.msra.mxu0 0.0
  %663 = vmatprep.subr.mxu0 0.0
  %664 = vmatpush1.msra.mxu0 0.0
  %665 = vmatprep.subr.mxu0 0.0
  %666 = vmatpush1.msra.mxu0 0.0
  %667 = vmatprep.mubr.f32.mxu0 0.0
  %668 = vmatmul.mubr.f32.gmra.mrb[0].mxu0 %v601
  %v669 = vpop.f32.mrb[0].mxu0
  %v670 = vadd.f32 0.0, %v669
  %v671 = vpop.f32.mrb[0].mxu0
  %672 = vdwg.mxu0
  %v673 = vadd.f32 %v160, %v670
  %v674 = vxor.u32 %v673, 2147483648
  %v675 = vmul.f32 %v674, 1.442695
  %v676 = vpow.pop %v675
  %v677 = vadd.f32 %v676, 1.0
  %v678 = vrcp.pop %v677
  %v679 = vmul.f32 1.0, %v678
  %v680 = vtanh.pop %v673
  %v681 = vmul.f32 %v679, %v591
  %683 = vrot.lane.b32.xlu0 %v680, 64
  %v684 = vpop.permute.xlu0 %683
  %v686 = vmul.f32 %v679, %v684
  %688 = vrot.lane.b32.xlu0 %v686, 32
  %v689 = vpop.permute.xlu0 %688
  %v691 = vadd.f32 %v681, %v689
  %v692 = vtanh.pop %v691
  %694 = vrot.lane.b32.xlu0 %v692, 64
  %v695 = vpop.permute.xlu0 %694
  %v697 = vmul.f32 %v679, %v695
  %699 = vrot.lane.b32.xlu0 %v697, 32
  %v700 = vpop.permute.xlu0 %699
  %v701 = vsel %vm200, %v700, 0
  %703 = vmatprep.subr.mxu0 0.0
  %704 = vmatpush1.msra.mxu0 %v17
  %705 = vmatprep.subr.mxu0 0.0
  %706 = vmatpush1.msra.mxu0 %v18
  %707 = vmatprep.subr.mxu0 0.0
  %708 = vmatpush1.msra.mxu0 %v19
  %709 = vmatprep.subr.mxu0 0.0
  %710 = vmatpush1.msra.mxu0 %v20
  %711 = vmatprep.subr.mxu0 0.0
  %712 = vmatpush1.msra.mxu0 0.0
  %713 = vmatprep.subr.mxu0 0.0
  %714 = vmatpush1.msra.mxu0 0.0
  %715 = vmatprep.subr.mxu0 0.0
  %716 = vmatpush1.msra.mxu0 0.0
  %717 = vmatprep.subr.mxu0 0.0
  %718 = vmatpush1.msra.mxu0 0.0
  %719 = vmatprep.subr.mxu0 0.0
  %720 = vmatpush1.msra.mxu0 0.0
  %721 = vmatprep.subr.mxu0 0.0
  %722 = vmatpush1.msra.mxu0 0.0
  %723 = vmatprep.subr.mxu0 0.0
  %724 = vmatpush1.msra.mxu0 0.0
  %725 = vmatprep.subr.mxu0 0.0
  %726 = vmatpush1.msra.mxu0 0.0
  %727 = vmatprep.subr.mxu0 0.0
  %728 = vmatpush1.msra.mxu0 0.0
  %729 = vmatprep.subr.mxu0 0.0
  %730 = vmatpush1.msra.mxu0 0.0
  %731 = vmatprep.subr.mxu0 0.0
  %732 = vmatpush1.msra.mxu0 0.0
  %733 = vmatprep.subr.mxu0 0.0
  %734 = vmatpush1.msra.mxu0 0.0
  %735 = vmatprep.subr.mxu0 0.0
  %736 = vmatpush1.msra.mxu0 0.0
  %737 = vmatprep.subr.mxu0 0.0
  %738 = vmatpush1.msra.mxu0 0.0
  %739 = vmatprep.subr.mxu0 0.0
  %740 = vmatpush1.msra.mxu0 0.0
  %741 = vmatprep.subr.mxu0 0.0
  %742 = vmatpush1.msra.mxu0 0.0
  %743 = vmatprep.subr.mxu0 0.0
  %744 = vmatpush1.msra.mxu0 0.0
  %745 = vmatprep.subr.mxu0 0.0
  %746 = vmatpush1.msra.mxu0 0.0
  %747 = vmatprep.subr.mxu0 0.0
  %748 = vmatpush1.msra.mxu0 0.0
  %749 = vmatprep.subr.mxu0 0.0
  %750 = vmatpush1.msra.mxu0 0.0
  %751 = vmatprep.subr.mxu0 0.0
  %752 = vmatpush1.msra.mxu0 0.0
  %753 = vmatprep.subr.mxu0 0.0
  %754 = vmatpush1.msra.mxu0 0.0
  %755 = vmatprep.subr.mxu0 0.0
  %756 = vmatpush1.msra.mxu0 0.0
  %757 = vmatprep.subr.mxu0 0.0
  %758 = vmatpush1.msra.mxu0 0.0
  %759 = vmatprep.subr.mxu0 0.0
  %760 = vmatpush1.msra.mxu0 0.0
  %761 = vmatprep.subr.mxu0 0.0
  %762 = vmatpush1.msra.mxu0 0.0
  %763 = vmatprep.subr.mxu0 0.0
  %764 = vmatpush1.msra.mxu0 0.0
  %765 = vmatprep.subr.mxu0 0.0
  %766 = vmatpush1.msra.mxu0 0.0
  %767 = vmatprep.mubr.f32.mxu0 0.0
  %768 = vmatmul.mubr.f32.gmra.mrb[0].mxu0 %v701
  %v769 = vpop.f32.mrb[0].mxu0
  %v770 = vadd.f32 0.0, %v769
  %v771 = vpop.f32.mrb[0].mxu0
  %772 = vdwg.mxu0
  %v773 = vadd.f32 %v165, %v770
  %v774 = vxor.u32 %v773, 2147483648
  %v775 = vmul.f32 %v774, 1.442695
  %v776 = vpow.pop %v775
  %v777 = vadd.f32 %v776, 1.0
  %v778 = vrcp.pop %v777
  %v779 = vmul.f32 1.0, %v778
  %v780 = vtanh.pop %v773
  %v781 = vmul.f32 %v779, %v691
  %783 = vrot.lane.b32.xlu0 %v780, 64
  %v784 = vpop.permute.xlu0 %783
  %v786 = vmul.f32 %v779, %v784
  %788 = vrot.lane.b32.xlu0 %v786, 32
  %v789 = vpop.permute.xlu0 %788
  %v791 = vadd.f32 %v781, %v789
  %v792 = vtanh.pop %v791
  %794 = vrot.lane.b32.xlu0 %v792, 64
  %v795 = vpop.permute.xlu0 %794
  %v797 = vmul.f32 %v779, %v795
  %799 = vrot.lane.b32.xlu0 %v797, 32
  %v800 = vpop.permute.xlu0 %799
  %v801 = vsel %vm200, %v800, 0
  %803 = vmatprep.subr.mxu0 0.0
  %804 = vmatpush1.msra.mxu0 %v17
  %805 = vmatprep.subr.mxu0 0.0
  %806 = vmatpush1.msra.mxu0 %v18
  %807 = vmatprep.subr.mxu0 0.0
  %808 = vmatpush1.msra.mxu0 %v19
  %809 = vmatprep.subr.mxu0 0.0
  %810 = vmatpush1.msra.mxu0 %v20
  %811 = vmatprep.subr.mxu0 0.0
  %812 = vmatpush1.msra.mxu0 0.0
  %813 = vmatprep.subr.mxu0 0.0
  %814 = vmatpush1.msra.mxu0 0.0
  %815 = vmatprep.subr.mxu0 0.0
  %816 = vmatpush1.msra.mxu0 0.0
  %817 = vmatprep.subr.mxu0 0.0
  %818 = vmatpush1.msra.mxu0 0.0
  %819 = vmatprep.subr.mxu0 0.0
  %820 = vmatpush1.msra.mxu0 0.0
  %821 = vmatprep.subr.mxu0 0.0
  %822 = vmatpush1.msra.mxu0 0.0
  %823 = vmatprep.subr.mxu0 0.0
  %824 = vmatpush1.msra.mxu0 0.0
  %825 = vmatprep.subr.mxu0 0.0
  %826 = vmatpush1.msra.mxu0 0.0
  %827 = vmatprep.subr.mxu0 0.0
  %828 = vmatpush1.msra.mxu0 0.0
  %829 = vmatprep.subr.mxu0 0.0
  %830 = vmatpush1.msra.mxu0 0.0
  %831 = vmatprep.subr.mxu0 0.0
  %832 = vmatpush1.msra.mxu0 0.0
  %833 = vmatprep.subr.mxu0 0.0
  %834 = vmatpush1.msra.mxu0 0.0
  %835 = vmatprep.subr.mxu0 0.0
  %836 = vmatpush1.msra.mxu0 0.0
  %837 = vmatprep.subr.mxu0 0.0
  %838 = vmatpush1.msra.mxu0 0.0
  %839 = vmatprep.subr.mxu0 0.0
  %840 = vmatpush1.msra.mxu0 0.0
  %841 = vmatprep.subr.mxu0 0.0
  %842 = vmatpush1.msra.mxu0 0.0
  %843 = vmatprep.subr.mxu0 0.0
  %844 = vmatpush1.msra.mxu0 0.0
  %845 = vmatprep.subr.mxu0 0.0
  %846 = vmatpush1.msra.mxu0 0.0
  %847 = vmatprep.subr.mxu0 0.0
  %848 = vmatpush1.msra.mxu0 0.0
  %849 = vmatprep.subr.mxu0 0.0
  %850 = vmatpush1.msra.mxu0 0.0
  %851 = vmatprep.subr.mxu0 0.0
  %852 = vmatpush1.msra.mxu0 0.0
  %853 = vmatprep.subr.mxu0 0.0
  %854 = vmatpush1.msra.mxu0 0.0
  %855 = vmatprep.subr.mxu0 0.0
  %856 = vmatpush1.msra.mxu0 0.0
  %857 = vmatprep.subr.mxu0 0.0
  %858 = vmatpush1.msra.mxu0 0.0
  %859 = vmatprep.subr.mxu0 0.0
  %860 = vmatpush1.msra.mxu0 0.0
  %861 = vmatprep.subr.mxu0 0.0
  %862 = vmatpush1.msra.mxu0 0.0
  %863 = vmatprep.subr.mxu0 0.0
  %864 = vmatpush1.msra.mxu0 0.0
  %865 = vmatprep.subr.mxu0 0.0
  %866 = vmatpush1.msra.mxu0 0.0
  %867 = vmatprep.mubr.f32.mxu0 0.0
  %868 = vmatmul.mubr.f32.gmra.mrb[0].mxu0 %v801
  %v869 = vpop.f32.mrb[0].mxu0
  %v870 = vadd.f32 0.0, %v869
  %v871 = vpop.f32.mrb[0].mxu0
  %872 = vdwg.mxu0
  %v873 = vadd.f32 %v170, %v870
  %v874 = vxor.u32 %v873, 2147483648
  %v875 = vmul.f32 %v874, 1.442695
  %v876 = vpow.pop %v875
  %v877 = vadd.f32 %v876, 1.0
  %v878 = vrcp.pop %v877
  %v879 = vmul.f32 1.0, %v878
  %v880 = vtanh.pop %v873
  %v881 = vmul.f32 %v879, %v791
  %883 = vrot.lane.b32.xlu0 %v880, 64
  %v884 = vpop.permute.xlu0 %883
  %v886 = vmul.f32 %v879, %v884
  %888 = vrot.lane.b32.xlu0 %v886, 32
  %v889 = vpop.permute.xlu0 %888
  %v891 = vadd.f32 %v881, %v889
  %v892 = vtanh.pop %v891
  %894 = vrot.lane.b32.xlu0 %v892, 64
  %v895 = vpop.permute.xlu0 %894
  %v897 = vmul.f32 %v879, %v895
  %899 = vrot.lane.b32.xlu0 %v897, 32
  %v900 = vpop.permute.xlu0 %899
  %902 = vst.msk [vmem:[%s3] sm:$0xff] %vm200, %v900
  %v903 = vlaneseq
  %v904 = vshrl.u32 %v903, 7
  %v905 = vsub.s32 0, %v904
  %v906 = vrot.slane %v30, %v905
  %v907 = vsel %vm200, %v900, 0
  %909 = vmatprep.subr.mxu0 0.0
  %910 = vmatpush1.msra.mxu0 %v21
  %911 = vmatprep.subr.mxu0 0.0
  %912 = vmatpush1.msra.mxu0 %v22
  %913 = vmatprep.subr.mxu0 0.0
  %914 = vmatpush1.msra.mxu0 %v23
  %915 = vmatprep.subr.mxu0 0.0
  %916 = vmatpush1.msra.mxu0 %v24
  %917 = vmatprep.subr.mxu0 0.0
  %918 = vmatpush1.msra.mxu0 0.0
  %919 = vmatprep.subr.mxu0 0.0
  %920 = vmatpush1.msra.mxu0 0.0
  %921 = vmatprep.subr.mxu0 0.0
  %922 = vmatpush1.msra.mxu0 0.0
  %923 = vmatprep.subr.mxu0 0.0
  %924 = vmatpush1.msra.mxu0 0.0
  %925 = vmatprep.subr.mxu0 0.0
  %926 = vmatpush1.msra.mxu0 0.0
  %927 = vmatprep.subr.mxu0 0.0
  %928 = vmatpush1.msra.mxu0 0.0
  %929 = vmatprep.subr.mxu0 0.0
  %930 = vmatpush1.msra.mxu0 0.0
  %931 = vmatprep.subr.mxu0 0.0
  %932 = vmatpush1.msra.mxu0 0.0
  %933 = vmatprep.subr.mxu0 0.0
  %934 = vmatpush1.msra.mxu0 0.0
  %935 = vmatprep.subr.mxu0 0.0
  %936 = vmatpush1.msra.mxu0 0.0
  %937 = vmatprep.subr.mxu0 0.0
  %938 = vmatpush1.msra.mxu0 0.0
  %939 = vmatprep.subr.mxu0 0.0
  %940 = vmatpush1.msra.mxu0 0.0
  %941 = vmatprep.subr.mxu0 0.0
  %942 = vmatpush1.msra.mxu0 0.0
  %943 = vmatprep.subr.mxu0 0.0
  %944 = vmatpush1.msra.mxu0 0.0
  %945 = vmatprep.subr.mxu0 0.0
  %946 = vmatpush1.msra.mxu0 0.0
  %947 = vmatprep.subr.mxu0 0.0
  %948 = vmatpush1.msra.mxu0 0.0
  %949 = vmatprep.subr.mxu0 0.0
  %950 = vmatpush1.msra.mxu0 0.0
  %951 = vmatprep.subr.mxu0 0.0
  %952 = vmatpush1.msra.mxu0 0.0
  %953 = vmatprep.subr.mxu0 0.0
  %954 = vmatpush1.msra.mxu0 0.0
  %955 = vmatprep.subr.mxu0 0.0
  %956 = vmatpush1.msra.mxu0 0.0
  %957 = vmatprep.subr.mxu0 0.0
  %958 = vmatpush1.msra.mxu0 0.0
  %959 = vmatprep.subr.mxu0 0.0
  %960 = vmatpush1.msra.mxu0 0.0
  %961 = vmatprep.subr.mxu0 0.0
  %962 = vmatpush1.msra.mxu0 0.0
  %963 = vmatprep.subr.mxu0 0.0
  %964 = vmatpush1.msra.mxu0 0.0
  %965 = vmatprep.subr.mxu0 0.0
  %966 = vmatpush1.msra.mxu0 0.0
  %967 = vmatprep.subr.mxu0 0.0
  %968 = vmatpush1.msra.mxu0 0.0
  %969 = vmatprep.subr.mxu0 0.0
  %970 = vmatpush1.msra.mxu0 0.0
  %971 = vmatprep.subr.mxu0 0.0
  %972 = vmatpush1.msra.mxu0 0.0
  %973 = vmatprep.mubr.f32.mxu0 0.0
  %974 = vmatmul.mubr.f32.gmra.mrb[0].mxu0 %v907
  %v975 = vpop.f32.mrb[0].mxu0
  %v976 = vadd.f32 %v906, %v975
  %v977 = vpop.f32.mrb[0].mxu0
  %978 = vdwg.mxu0
  %v979 = vxor.u32 %v976, 2147483648
  %v980 = vmul.f32 %v979, 1.442695
  %v981 = vpow.pop %v980
  %v982 = vadd.f32 %v981, 1.0
  %v983 = vrcp.pop %v982
  %v984 = vmul.f32 1.0, %v983
  %v985 = vtanh.pop %v976
  %v986 = vmul.f32 %v984, %v891
  %988 = vrot.lane.b32.xlu0 %v985, 64
  %v989 = vpop.permute.xlu0 %988
  %v991 = vmul.f32 %v984, %v989
  %993 = vrot.lane.b32.xlu0 %v991, 32
  %v994 = vpop.permute.xlu0 %993
  %v996 = vadd.f32 %v986, %v994
  %v997 = vtanh.pop %v996
  %999 = vrot.lane.b32.xlu0 %v997, 64
  %v1000 = vpop.permute.xlu0 %999
  %v1002 = vmul.f32 %v984, %v1000
  %1004 = vrot.lane.b32.xlu0 %v1002, 32
  %v1005 = vpop.permute.xlu0 %1004
  %1007 = vst.msk [vmem:[#allocation2] sm:$0xff] %vm200, %v1005
  %v1008 = vsel %vm200, %v1005, 0
  %1010 = vmatprep.subr.mxu0 0.0
  %1011 = vmatpush1.msra.mxu0 %v25
  %1012 = vmatprep.subr.mxu0 0.0
  %1013 = vmatpush1.msra.mxu0 %v26
  %1014 = vmatprep.subr.mxu0 0.0
  %1015 = vmatpush1.msra.mxu0 %v27
  %1016 = vmatprep.subr.mxu0 0.0
  %1017 = vmatpush1.msra.mxu0 %v28
  %1018 = vmatprep.subr.mxu0 0.0
  %1019 = vmatpush1.msra.mxu0 0.0
  %1020 = vmatprep.subr.mxu0 0.0
  %1021 = vmatpush1.msra.mxu0 0.0
  %1022 = vmatprep.subr.mxu0 0.0
  %1023 = vmatpush1.msra.mxu0 0.0
  %1024 = vmatprep.subr.mxu0 0.0
  %1025 = vmatpush1.msra.mxu0 0.0
  %1026 = vmatprep.subr.mxu0 0.0
  %1027 = vmatpush1.msra.mxu0 0.0
  %1028 = vmatprep.subr.mxu0 0.0
  %1029 = vmatpush1.msra.mxu0 0.0
  %1030 = vmatprep.subr.mxu0 0.0
  %1031 = vmatpush1.msra.mxu0 0.0
  %1032 = vmatprep.subr.mxu0 0.0
  %1033 = vmatpush1.msra.mxu0 0.0
  %1034 = vmatprep.subr.mxu0 0.0
  %1035 = vmatpush1.msra.mxu0 0.0
  %1036 = vmatprep.subr.mxu0 0.0
  %1037 = vmatpush1.msra.mxu0 0.0
  %1038 = vmatprep.subr.mxu0 0.0
  %1039 = vmatpush1.msra.mxu0 0.0
  %1040 = vmatprep.subr.mxu0 0.0
  %1041 = vmatpush1.msra.mxu0 0.0
  %1042 = vmatprep.subr.mxu0 0.0
  %1043 = vmatpush1.msra.mxu0 0.0
  %1044 = vmatprep.subr.mxu0 0.0
  %1045 = vmatpush1.msra.mxu0 0.0
  %1046 = vmatprep.subr.mxu0 0.0
  %1047 = vmatpush1.msra.mxu0 0.0
  %1048 = vmatprep.subr.mxu0 0.0
  %1049 = vmatpush1.msra.mxu0 0.0
  %1050 = vmatprep.subr.mxu0 0.0
  %1051 = vmatpush1.msra.mxu0 0.0
  %1052 = vmatprep.subr.mxu0 0.0
  %1053 = vmatpush1.msra.mxu0 0.0
  %1054 = vmatprep.subr.mxu0 0.0
  %1055 = vmatpush1.msra.mxu0 0.0
  %1056 = vmatprep.subr.mxu0 0.0
  %1057 = vmatpush1.msra.mxu0 0.0
  %1058 = vmatprep.subr.mxu0 0.0
  %1059 = vmatpush1.msra.mxu0 0.0
  %1060 = vmatprep.subr.mxu0 0.0
  %1061 = vmatpush1.msra.mxu0 0.0
  %1062 = vmatprep.subr.mxu0 0.0
  %1063 = vmatpush1.msra.mxu0 0.0
  %1064 = vmatprep.subr.mxu0 0.0
  %1065 = vmatpush1.msra.mxu0 0.0
  %1066 = vmatprep.subr.mxu0 0.0
  %1067 = vmatpush1.msra.mxu0 0.0
  %1068 = vmatprep.subr.mxu0 0.0
  %1069 = vmatpush1.msra.mxu0 0.0
  %1070 = vmatprep.subr.mxu0 0.0
  %1071 = vmatpush1.msra.mxu0 0.0
  %1072 = vmatprep.subr.mxu0 0.0
  %1073 = vmatpush1.msra.mxu0 0.0
  %1074 = vmatprep.mubr.f32.mxu0 0.0
  %1075 = vmatmul.mubr.f32.gmra.mrb[0].mxu0 %v1008
  %v1076 = vpop.f32.mrb[0].mxu0
  %v1077 = vadd.f32 %v906, %v1076
  %v1078 = vpop.f32.mrb[0].mxu0
  %1079 = vdwg.mxu0
  %v1080 = vxor.u32 %v1077, 2147483648
  %v1081 = vmul.f32 %v1080, 1.442695
  %v1082 = vpow.pop %v1081
  %v1083 = vadd.f32 %v1082, 1.0
  %v1084 = vrcp.pop %v1083
  %v1085 = vmul.f32 1.0, %v1084
  %v1086 = vtanh.pop %v1077
  %v1087 = vmul.f32 %v1085, %v996
  %1089 = vrot.lane.b32.xlu0 %v1086, 64
  %v1090 = vpop.permute.xlu0 %1089
  %v1092 = vmul.f32 %v1085, %v1090
  %1094 = vrot.lane.b32.xlu0 %v1092, 32
  %v1095 = vpop.permute.xlu0 %1094
  %v1097 = vadd.f32 %v1087, %v1095
  %v1098 = vtanh.pop %v1097
  %1100 = vrot.lane.b32.xlu0 %v1098, 64
  %v1101 = vpop.permute.xlu0 %1100
  %v1103 = vmul.f32 %v1085, %v1101
  %1105 = vrot.lane.b32.xlu0 %v1103, 32
  %v1106 = vpop.permute.xlu0 %1105
  %s1108 = scalar_lea.vmem [#allocation2], 8
  %1109 = vst.msk [vmem:[%s1108] sm:$0xff] %vm200, %v1106
  %v1110 = vsel %vm200, %v1106, 0
  %1112 = vmatprep.subr.mxu0 0.0
  %1113 = vmatpush1.msra.mxu0 %v25
  %1114 = vmatprep.subr.mxu0 0.0
  %1115 = vmatpush1.msra.mxu0 %v26
  %1116 = vmatprep.subr.mxu0 0.0
  %1117 = vmatpush1.msra.mxu0 %v27
  %1118 = vmatprep.subr.mxu0 0.0
  %1119 = vmatpush1.msra.mxu0 %v28
  %1120 = vmatprep.subr.mxu0 0.0
  %1121 = vmatpush1.msra.mxu0 0.0
  %1122 = vmatprep.subr.mxu0 0.0
  %1123 = vmatpush1.msra.mxu0 0.0
  %1124 = vmatprep.subr.mxu0 0.0
  %1125 = vmatpush1.msra.mxu0 0.0
  %1126 = vmatprep.subr.mxu0 0.0
  %1127 = vmatpush1.msra.mxu0 0.0
  %1128 = vmatprep.subr.mxu0 0.0
  %1129 = vmatpush1.msra.mxu0 0.0
  %1130 = vmatprep.subr.mxu0 0.0
  %1131 = vmatpush1.msra.mxu0 0.0
  %1132 = vmatprep.subr.mxu0 0.0
  %1133 = vmatpush1.msra.mxu0 0.0
  %1134 = vmatprep.subr.mxu0 0.0
  %1135 = vmatpush1.msra.mxu0 0.0
  %1136 = vmatprep.subr.mxu0 0.0
  %1137 = vmatpush1.msra.mxu0 0.0
  %1138 = vmatprep.subr.mxu0 0.0
  %1139 = vmatpush1.msra.mxu0 0.0
  %1140 = vmatprep.subr.mxu0 0.0
  %1141 = vmatpush1.msra.mxu0 0.0
  %1142 = vmatprep.subr.mxu0 0.0
  %1143 = vmatpush1.msra.mxu0 0.0
  %1144 = vmatprep.subr.mxu0 0.0
  %1145 = vmatpush1.msra.mxu0 0.0
  %1146 = vmatprep.subr.mxu0 0.0
  %1147 = vmatpush1.msra.mxu0 0.0
  %1148 = vmatprep.subr.mxu0 0.0
  %1149 = vmatpush1.msra.mxu0 0.0
  %1150 = vmatprep.subr.mxu0 0.0
  %1151 = vmatpush1.msra.mxu0 0.0
  %1152 = vmatprep.subr.mxu0 0.0
  %1153 = vmatpush1.msra.mxu0 0.0
  %1154 = vmatprep.subr.mxu0 0.0
  %1155 = vmatpush1.msra.mxu0 0.0
  %1156 = vmatprep.subr.mxu0 0.0
  %1157 = vmatpush1.msra.mxu0 0.0
  %1158 = vmatprep.subr.mxu0 0.0
  %1159 = vmatpush1.msra.mxu0 0.0
  %1160 = vmatprep.subr.mxu0 0.0
  %1161 = vmatpush1.msra.mxu0 0.0
  %1162 = vmatprep.subr.mxu0 0.0
  %1163 = vmatpush1.msra.mxu0 0.0
  %1164 = vmatprep.subr.mxu0 0.0
  %1165 = vmatpush1.msra.mxu0 0.0
  %1166 = vmatprep.subr.mxu0 0.0
  %1167 = vmatpush1.msra.mxu0 0.0
  %1168 = vmatprep.subr.mxu0 0.0
  %1169 = vmatpush1.msra.mxu0 0.0
  %1170 = vmatprep.subr.mxu0 0.0
  %1171 = vmatpush1.msra.mxu0 0.0
  %1172 = vmatprep.subr.mxu0 0.0
  %1173 = vmatpush1.msra.mxu0 0.0
  %1174 = vmatprep.subr.mxu0 0.0
  %1175 = vmatpush1.msra.mxu0 0.0
  %1176 = vmatprep.mubr.f32.mxu0 0.0
  %1177 = vmatmul.mubr.f32.gmra.mrb[0].mxu0 %v1110
  %v1178 = vpop.f32.mrb[0].mxu0
  %v1179 = vadd.f32 %v906, %v1178
  %v1180 = vpop.f32.mrb[0].mxu0
  %1181 = vdwg.mxu0
  %v1182 = vxor.u32 %v1179, 2147483648
  %v1183 = vmul.f32 %v1182, 1.442695
  %v1184 = vpow.pop %v1183
  %v1185 = vadd.f32 %v1184, 1.0
  %v1186 = vrcp.pop %v1185
  %v1187 = vmul.f32 1.0, %v1186
  %v1188 = vtanh.pop %v1179
  %v1189 = vmul.f32 %v1187, %v1097
  %1191 = vrot.lane.b32.xlu0 %v1188, 64
  %v1192 = vpop.permute.xlu0 %1191
  %v1194 = vmul.f32 %v1187, %v1192
  %1196 = vrot.lane.b32.xlu0 %v1194, 32
  %v1197 = vpop.permute.xlu0 %1196
  %v1199 = vadd.f32 %v1189, %v1197
  %v1200 = vtanh.pop %v1199
  %1202 = vrot.lane.b32.xlu0 %v1200, 64
  %v1203 = vpop.permute.xlu0 %1202
  %v1205 = vmul.f32 %v1187, %v1203
  %1207 = vrot.lane.b32.xlu0 %v1205, 32
  %v1208 = vpop.permute.xlu0 %1207
  %s1210 = scalar_lea.vmem [#allocation2], 16
  %1211 = vst.msk [vmem:[%s1210] sm:$0xff] %vm200, %v1208
  %v1212 = vsel %vm200, %v1208, 0
  %1214 = vmatprep.subr.mxu0 0.0
  %1215 = vmatpush1.msra.mxu0 %v25
  %1216 = vmatprep.subr.mxu0 0.0
  %1217 = vmatpush1.msra.mxu0 %v26
  %1218 = vmatprep.subr.mxu0 0.0
  %1219 = vmatpush1.msra.mxu0 %v27
  %1220 = vmatprep.subr.mxu0 0.0
  %1221 = vmatpush1.msra.mxu0 %v28
  %1222 = vmatprep.subr.mxu0 0.0
  %1223 = vmatpush1.msra.mxu0 0.0
  %1224 = vmatprep.subr.mxu0 0.0
  %1225 = vmatpush1.msra.mxu0 0.0
  %1226 = vmatprep.subr.mxu0 0.0
  %1227 = vmatpush1.msra.mxu0 0.0
  %1228 = vmatprep.subr.mxu0 0.0
  %1229 = vmatpush1.msra.mxu0 0.0
  %1230 = vmatprep.subr.mxu0 0.0
  %1231 = vmatpush1.msra.mxu0 0.0
  %1232 = vmatprep.subr.mxu0 0.0
  %1233 = vmatpush1.msra.mxu0 0.0
  %1234 = vmatprep.subr.mxu0 0.0
  %1235 = vmatpush1.msra.mxu0 0.0
  %1236 = vmatprep.subr.mxu0 0.0
  %1237 = vmatpush1.msra.mxu0 0.0
  %1238 = vmatprep.subr.mxu0 0.0
  %1239 = vmatpush1.msra.mxu0 0.0
  %1240 = vmatprep.subr.mxu0 0.0
  %1241 = vmatpush1.msra.mxu0 0.0
  %1242 = vmatprep.subr.mxu0 0.0
  %1243 = vmatpush1.msra.mxu0 0.0
  %1244 = vmatprep.subr.mxu0 0.0
  %1245 = vmatpush1.msra.mxu0 0.0
  %1246 = vmatprep.subr.mxu0 0.0
  %1247 = vmatpush1.msra.mxu0 0.0
  %1248 = vmatprep.subr.mxu0 0.0
  %1249 = vmatpush1.msra.mxu0 0.0
  %1250 = vmatprep.subr.mxu0 0.0
  %1251 = vmatpush1.msra.mxu0 0.0
  %1252 = vmatprep.subr.mxu0 0.0
  %1253 = vmatpush1.msra.mxu0 0.0
  %1254 = vmatprep.subr.mxu0 0.0
  %1255 = vmatpush1.msra.mxu0 0.0
  %1256 = vmatprep.subr.mxu0 0.0
  %1257 = vmatpush1.msra.mxu0 0.0
  %1258 = vmatprep.subr.mxu0 0.0
  %1259 = vmatpush1.msra.mxu0 0.0
  %1260 = vmatprep.subr.mxu0 0.0
  %1261 = vmatpush1.msra.mxu0 0.0
  %1262 = vmatprep.subr.mxu0 0.0
  %1263 = vmatpush1.msra.mxu0 0.0
  %1264 = vmatprep.subr.mxu0 0.0
  %1265 = vmatpush1.msra.mxu0 0.0
  %1266 = vmatprep.subr.mxu0 0.0
  %1267 = vmatpush1.msra.mxu0 0.0
  %1268 = vmatprep.subr.mxu0 0.0
  %1269 = vmatpush1.msra.mxu0 0.0
  %1270 = vmatprep.subr.mxu0 0.0
  %1271 = vmatpush1.msra.mxu0 0.0
  %1272 = vmatprep.subr.mxu0 0.0
  %1273 = vmatpush1.msra.mxu0 0.0
  %1274 = vmatprep.subr.mxu0 0.0
  %1275 = vmatpush1.msra.mxu0 0.0
  %1276 = vmatprep.subr.mxu0 0.0
  %1277 = vmatpush1.msra.mxu0 0.0
  %1278 = vmatprep.mubr.f32.mxu0 0.0
  %1279 = vmatmul.mubr.f32.gmra.mrb[0].mxu0 %v1212
  %v1280 = vpop.f32.mrb[0].mxu0
  %v1281 = vadd.f32 %v906, %v1280
  %v1282 = vpop.f32.mrb[0].mxu0
  %1283 = vdwg.mxu0
  %v1284 = vxor.u32 %v1281, 2147483648
  %v1285 = vmul.f32 %v1284, 1.442695
  %v1286 = vpow.pop %v1285
  %v1287 = vadd.f32 %v1286, 1.0
  %v1288 = vrcp.pop %v1287
  %v1289 = vmul.f32 1.0, %v1288
  %v1290 = vtanh.pop %v1281
  %v1291 = vmul.f32 %v1289, %v1199
  %1293 = vrot.lane.b32.xlu0 %v1290, 64
  %v1294 = vpop.permute.xlu0 %1293
  %v1296 = vmul.f32 %v1289, %v1294
  %1298 = vrot.lane.b32.xlu0 %v1296, 32
  %v1299 = vpop.permute.xlu0 %1298
  %v1301 = vadd.f32 %v1291, %v1299
  %v1302 = vtanh.pop %v1301
  %1304 = vrot.lane.b32.xlu0 %v1302, 64
  %v1305 = vpop.permute.xlu0 %1304
  %v1307 = vmul.f32 %v1289, %v1305
  %1309 = vrot.lane.b32.xlu0 %v1307, 32
  %v1310 = vpop.permute.xlu0 %1309
  %s1312 = scalar_lea.vmem [#allocation2], 24
  %1313 = vst.msk [vmem:[%s1312] sm:$0xff] %vm200, %v1310
  %v1314 = vsel %vm200, %v1310, 0
  %1316 = vmatprep.subr.mxu0 0.0
  %1317 = vmatpush1.msra.mxu0 %v25
  %1318 = vmatprep.subr.mxu0 0.0
  %1319 = vmatpush1.msra.mxu0 %v26
  %1320 = vmatprep.subr.mxu0 0.0
  %1321 = vmatpush1.msra.mxu0 %v27
  %1322 = vmatprep.subr.mxu0 0.0
  %1323 = vmatpush1.msra.mxu0 %v28
  %1324 = vmatprep.subr.mxu0 0.0
  %1325 = vmatpush1.msra.mxu0 0.0
  %1326 = vmatprep.subr.mxu0 0.0
  %1327 = vmatpush1.msra.mxu0 0.0
  %1328 = vmatprep.subr.mxu0 0.0
  %1329 = vmatpush1.msra.mxu0 0.0
  %1330 = vmatprep.subr.mxu0 0.0
  %1331 = vmatpush1.msra.mxu0 0.0
  %1332 = vmatprep.subr.mxu0 0.0
  %1333 = vmatpush1.msra.mxu0 0.0
  %1334 = vmatprep.subr.mxu0 0.0
  %1335 = vmatpush1.msra.mxu0 0.0
  %1336 = vmatprep.subr.mxu0 0.0
  %1337 = vmatpush1.msra.mxu0 0.0
  %1338 = vmatprep.subr.mxu0 0.0
  %1339 = vmatpush1.msra.mxu0 0.0
  %1340 = vmatprep.subr.mxu0 0.0
  %1341 = vmatpush1.msra.mxu0 0.0
  %1342 = vmatprep.subr.mxu0 0.0
  %1343 = vmatpush1.msra.mxu0 0.0
  %1344 = vmatprep.subr.mxu0 0.0
  %1345 = vmatpush1.msra.mxu0 0.0
  %1346 = vmatprep.subr.mxu0 0.0
  %1347 = vmatpush1.msra.mxu0 0.0
  %1348 = vmatprep.subr.mxu0 0.0
  %1349 = vmatpush1.msra.mxu0 0.0
  %1350 = vmatprep.subr.mxu0 0.0
  %1351 = vmatpush1.msra.mxu0 0.0
  %1352 = vmatprep.subr.mxu0 0.0
  %1353 = vmatpush1.msra.mxu0 0.0
  %1354 = vmatprep.subr.mxu0 0.0
  %1355 = vmatpush1.msra.mxu0 0.0
  %1356 = vmatprep.subr.mxu0 0.0
  %1357 = vmatpush1.msra.mxu0 0.0
  %1358 = vmatprep.subr.mxu0 0.0
  %1359 = vmatpush1.msra.mxu0 0.0
  %1360 = vmatprep.subr.mxu0 0.0
  %1361 = vmatpush1.msra.mxu0 0.0
  %1362 = vmatprep.subr.mxu0 0.0
  %1363 = vmatpush1.msra.mxu0 0.0
  %1364 = vmatprep.subr.mxu0 0.0
  %1365 = vmatpush1.msra.mxu0 0.0
  %1366 = vmatprep.subr.mxu0 0.0
  %1367 = vmatpush1.msra.mxu0 0.0
  %1368 = vmatprep.subr.mxu0 0.0
  %1369 = vmatpush1.msra.mxu0 0.0
  %1370 = vmatprep.subr.mxu0 0.0
  %1371 = vmatpush1.msra.mxu0 0.0
  %1372 = vmatprep.subr.mxu0 0.0
  %1373 = vmatpush1.msra.mxu0 0.0
  %1374 = vmatprep.subr.mxu0 0.0
  %1375 = vmatpush1.msra.mxu0 0.0
  %1376 = vmatprep.subr.mxu0 0.0
  %1377 = vmatpush1.msra.mxu0 0.0
  %1378 = vmatprep.subr.mxu0 0.0
  %1379 = vmatpush1.msra.mxu0 0.0
  %1380 = vmatprep.mubr.f32.mxu0 0.0
  %1381 = vmatmul.mubr.f32.gmra.mrb[0].mxu0 %v1314
  %v1382 = vpop.f32.mrb[0].mxu0
  %v1383 = vadd.f32 %v906, %v1382
  %v1384 = vpop.f32.mrb[0].mxu0
  %1385 = vdwg.mxu0
  %v1386 = vxor.u32 %v1383, 2147483648
  %v1387 = vmul.f32 %v1386, 1.442695
  %v1388 = vpow.pop %v1387
  %v1389 = vadd.f32 %v1388, 1.0
  %v1390 = vrcp.pop %v1389
  %v1391 = vmul.f32 1.0, %v1390
  %v1392 = vtanh.pop %v1383
  %v1393 = vmul.f32 %v1391, %v1301
  %1395 = vrot.lane.b32.xlu0 %v1392, 64
  %v1396 = vpop.permute.xlu0 %1395
  %v1398 = vmul.f32 %v1391, %v1396
  %1400 = vrot.lane.b32.xlu0 %v1398, 32
  %v1401 = vpop.permute.xlu0 %1400
  %v1403 = vadd.f32 %v1393, %v1401
  %v1404 = vtanh.pop %v1403
  %1406 = vrot.lane.b32.xlu0 %v1404, 64
  %v1407 = vpop.permute.xlu0 %1406
  %v1409 = vmul.f32 %v1391, %v1407
  %1411 = vrot.lane.b32.xlu0 %v1409, 32
  %v1412 = vpop.permute.xlu0 %1411
  %s1414 = scalar_lea.vmem [#allocation2], 32
  %1415 = vst.msk [vmem:[%s1414] sm:$0xff] %vm200, %v1412
  %v1416 = vsel %vm200, %v1412, 0
  %1418 = vmatprep.subr.mxu0 0.0
  %1419 = vmatpush1.msra.mxu0 %v25
  %1420 = vmatprep.subr.mxu0 0.0
  %1421 = vmatpush1.msra.mxu0 %v26
  %1422 = vmatprep.subr.mxu0 0.0
  %1423 = vmatpush1.msra.mxu0 %v27
  %1424 = vmatprep.subr.mxu0 0.0
  %1425 = vmatpush1.msra.mxu0 %v28
  %1426 = vmatprep.subr.mxu0 0.0
  %1427 = vmatpush1.msra.mxu0 0.0
  %1428 = vmatprep.subr.mxu0 0.0
  %1429 = vmatpush1.msra.mxu0 0.0
  %1430 = vmatprep.subr.mxu0 0.0
  %1431 = vmatpush1.msra.mxu0 0.0
  %1432 = vmatprep.subr.mxu0 0.0
  %1433 = vmatpush1.msra.mxu0 0.0
  %1434 = vmatprep.subr.mxu0 0.0
  %1435 = vmatpush1.msra.mxu0 0.0
  %1436 = vmatprep.subr.mxu0 0.0
  %1437 = vmatpush1.msra.mxu0 0.0
  %1438 = vmatprep.subr.mxu0 0.0
  %1439 = vmatpush1.msra.mxu0 0.0
  %1440 = vmatprep.subr.mxu0 0.0
  %1441 = vmatpush1.msra.mxu0 0.0
  %1442 = vmatprep.subr.mxu0 0.0
  %1443 = vmatpush1.msra.mxu0 0.0
  %1444 = vmatprep.subr.mxu0 0.0
  %1445 = vmatpush1.msra.mxu0 0.0
  %1446 = vmatprep.subr.mxu0 0.0
  %1447 = vmatpush1.msra.mxu0 0.0
  %1448 = vmatprep.subr.mxu0 0.0
  %1449 = vmatpush1.msra.mxu0 0.0
  %1450 = vmatprep.subr.mxu0 0.0
  %1451 = vmatpush1.msra.mxu0 0.0
  %1452 = vmatprep.subr.mxu0 0.0
  %1453 = vmatpush1.msra.mxu0 0.0
  %1454 = vmatprep.subr.mxu0 0.0
  %1455 = vmatpush1.msra.mxu0 0.0
  %1456 = vmatprep.subr.mxu0 0.0
  %1457 = vmatpush1.msra.mxu0 0.0
  %1458 = vmatprep.subr.mxu0 0.0
  %1459 = vmatpush1.msra.mxu0 0.0
  %1460 = vmatprep.subr.mxu0 0.0
  %1461 = vmatpush1.msra.mxu0 0.0
  %1462 = vmatprep.subr.mxu0 0.0
  %1463 = vmatpush1.msra.mxu0 0.0
  %1464 = vmatprep.subr.mxu0 0.0
  %1465 = vmatpush1.msra.mxu0 0.0
  %1466 = vmatprep.subr.mxu0 0.0
  %1467 = vmatpush1.msra.mxu0 0.0
  %1468 = vmatprep.subr.mxu0 0.0
  %1469 = vmatpush1.msra.mxu0 0.0
  %1470 = vmatprep.subr.mxu0 0.0
  %1471 = vmatpush1.msra.mxu0 0.0
  %1472 = vmatprep.subr.mxu0 0.0
  %1473 = vmatpush1.msra.mxu0 0.0
  %1474 = vmatprep.subr.mxu0 0.0
  %1475 = vmatpush1.msra.mxu0 0.0
  %1476 = vmatprep.subr.mxu0 0.0
  %1477 = vmatpush1.msra.mxu0 0.0
  %1478 = vmatprep.subr.mxu0 0.0
  %1479 = vmatpush1.msra.mxu0 0.0
  %1480 = vmatprep.subr.mxu0 0.0
  %1481 = vmatpush1.msra.mxu0 0.0
  %1482 = vmatprep.mubr.f32.mxu0 0.0
  %1483 = vmatmul.mubr.f32.gmra.mrb[0].mxu0 %v1416
  %v1484 = vpop.f32.mrb[0].mxu0
  %v1485 = vadd.f32 %v906, %v1484
  %v1486 = vpop.f32.mrb[0].mxu0
  %1487 = vdwg.mxu0
  %v1488 = vxor.u32 %v1485, 2147483648
  %v1489 = vmul.f32 %v1488, 1.442695
  %v1490 = vpow.pop %v1489
  %v1491 = vadd.f32 %v1490, 1.0
  %v1492 = vrcp.pop %v1491
  %v1493 = vmul.f32 1.0, %v1492
  %v1494 = vtanh.pop %v1485
  %v1495 = vmul.f32 %v1493, %v1403
  %1497 = vrot.lane.b32.xlu0 %v1494, 64
  %v1498 = vpop.permute.xlu0 %1497
  %v1500 = vmul.f32 %v1493, %v1498
  %1502 = vrot.lane.b32.xlu0 %v1500, 32
  %v1503 = vpop.permute.xlu0 %1502
  %v1505 = vadd.f32 %v1495, %v1503
  %v1506 = vtanh.pop %v1505
  %1508 = vrot.lane.b32.xlu0 %v1506, 64
  %v1509 = vpop.permute.xlu0 %1508
  %v1511 = vmul.f32 %v1493, %v1509
  %1513 = vrot.lane.b32.xlu0 %v1511, 32
  %v1514 = vpop.permute.xlu0 %1513
  %s1516 = scalar_lea.vmem [#allocation2], 40
  %1517 = vst.msk [vmem:[%s1516] sm:$0xff] %vm200, %v1514
  %v1518 = vsel %vm200, %v1514, 0
  %1520 = vmatprep.subr.mxu0 0.0
  %1521 = vmatpush1.msra.mxu0 %v25
  %1522 = vmatprep.subr.mxu0 0.0
  %1523 = vmatpush1.msra.mxu0 %v26
  %1524 = vmatprep.subr.mxu0 0.0
  %1525 = vmatpush1.msra.mxu0 %v27
  %1526 = vmatprep.subr.mxu0 0.0
  %1527 = vmatpush1.msra.mxu0 %v28
  %1528 = vmatprep.subr.mxu0 0.0
  %1529 = vmatpush1.msra.mxu0 0.0
  %1530 = vmatprep.subr.mxu0 0.0
  %1531 = vmatpush1.msra.mxu0 0.0
  %1532 = vmatprep.subr.mxu0 0.0
  %1533 = vmatpush1.msra.mxu0 0.0
  %1534 = vmatprep.subr.mxu0 0.0
  %1535 = vmatpush1.msra.mxu0 0.0
  %1536 = vmatprep.subr.mxu0 0.0
  %1537 = vmatpush1.msra.mxu0 0.0
  %1538 = vmatprep.subr.mxu0 0.0
  %1539 = vmatpush1.msra.mxu0 0.0
  %1540 = vmatprep.subr.mxu0 0.0
  %1541 = vmatpush1.msra.mxu0 0.0
  %1542 = vmatprep.subr.mxu0 0.0
  %1543 = vmatpush1.msra.mxu0 0.0
  %1544 = vmatprep.subr.mxu0 0.0
  %1545 = vmatpush1.msra.mxu0 0.0
  %1546 = vmatprep.subr.mxu0 0.0
  %1547 = vmatpush1.msra.mxu0 0.0
  %1548 = vmatprep.subr.mxu0 0.0
  %1549 = vmatpush1.msra.mxu0 0.0
  %1550 = vmatprep.subr.mxu0 0.0
  %1551 = vmatpush1.msra.mxu0 0.0
  %1552 = vmatprep.subr.mxu0 0.0
  %1553 = vmatpush1.msra.mxu0 0.0
  %1554 = vmatprep.subr.mxu0 0.0
  %1555 = vmatpush1.msra.mxu0 0.0
  %1556 = vmatprep.subr.mxu0 0.0
  %1557 = vmatpush1.msra.mxu0 0.0
  %1558 = vmatprep.subr.mxu0 0.0
  %1559 = vmatpush1.msra.mxu0 0.0
  %1560 = vmatprep.subr.mxu0 0.0
  %1561 = vmatpush1.msra.mxu0 0.0
  %1562 = vmatprep.subr.mxu0 0.0
  %1563 = vmatpush1.msra.mxu0 0.0
  %1564 = vmatprep.subr.mxu0 0.0
  %1565 = vmatpush1.msra.mxu0 0.0
  %1566 = vmatprep.subr.mxu0 0.0
  %1567 = vmatpush1.msra.mxu0 0.0
  %1568 = vmatprep.subr.mxu0 0.0
  %1569 = vmatpush1.msra.mxu0 0.0
  %1570 = vmatprep.subr.mxu0 0.0
  %1571 = vmatpush1.msra.mxu0 0.0
  %1572 = vmatprep.subr.mxu0 0.0
  %1573 = vmatpush1.msra.mxu0 0.0
  %1574 = vmatprep.subr.mxu0 0.0
  %1575 = vmatpush1.msra.mxu0 0.0
  %1576 = vmatprep.subr.mxu0 0.0
  %1577 = vmatpush1.msra.mxu0 0.0
  %1578 = vmatprep.subr.mxu0 0.0
  %1579 = vmatpush1.msra.mxu0 0.0
  %1580 = vmatprep.subr.mxu0 0.0
  %1581 = vmatpush1.msra.mxu0 0.0
  %1582 = vmatprep.subr.mxu0 0.0
  %1583 = vmatpush1.msra.mxu0 0.0
  %1584 = vmatprep.mubr.f32.mxu0 0.0
  %1585 = vmatmul.mubr.f32.gmra.mrb[0].mxu0 %v1518
  %v1586 = vpop.f32.mrb[0].mxu0
  %v1587 = vadd.f32 %v906, %v1586
  %v1588 = vpop.f32.mrb[0].mxu0
  %1589 = vdwg.mxu0
  %v1590 = vxor.u32 %v1587, 2147483648
  %v1591 = vmul.f32 %v1590, 1.442695
  %v1592 = vpow.pop %v1591
  %v1593 = vadd.f32 %v1592, 1.0
  %v1594 = vrcp.pop %v1593
  %v1595 = vmul.f32 1.0, %v1594
  %v1596 = vtanh.pop %v1587
  %v1597 = vmul.f32 %v1595, %v1505
  %1599 = vrot.lane.b32.xlu0 %v1596, 64
  %v1600 = vpop.permute.xlu0 %1599
  %v1602 = vmul.f32 %v1595, %v1600
  %1604 = vrot.lane.b32.xlu0 %v1602, 32
  %v1605 = vpop.permute.xlu0 %1604
  %v1607 = vadd.f32 %v1597, %v1605
  %v1608 = vtanh.pop %v1607
  %1610 = vrot.lane.b32.xlu0 %v1608, 64
  %v1611 = vpop.permute.xlu0 %1610
  %v1613 = vmul.f32 %v1595, %v1611
  %1615 = vrot.lane.b32.xlu0 %v1613, 32
  %v1616 = vpop.permute.xlu0 %1615
  %s1618 = scalar_lea.vmem [#allocation2], 48
  %1619 = vst.msk [vmem:[%s1618] sm:$0xff] %vm200, %v1616
  %v1620 = vsel %vm200, %v1616, 0
  %1622 = vmatprep.subr.mxu0 0.0
  %1623 = vmatpush1.msra.mxu0 %v25
  %1624 = vmatprep.subr.mxu0 0.0
  %1625 = vmatpush1.msra.mxu0 %v26
  %1626 = vmatprep.subr.mxu0 0.0
  %1627 = vmatpush1.msra.mxu0 %v27
  %1628 = vmatprep.subr.mxu0 0.0
  %1629 = vmatpush1.msra.mxu0 %v28
  %1630 = vmatprep.subr.mxu0 0.0
  %1631 = vmatpush1.msra.mxu0 0.0
  %1632 = vmatprep.subr.mxu0 0.0
  %1633 = vmatpush1.msra.mxu0 0.0
  %1634 = vmatprep.subr.mxu0 0.0
  %1635 = vmatpush1.msra.mxu0 0.0
  %1636 = vmatprep.subr.mxu0 0.0
  %1637 = vmatpush1.msra.mxu0 0.0
  %1638 = vmatprep.subr.mxu0 0.0
  %1639 = vmatpush1.msra.mxu0 0.0
  %1640 = vmatprep.subr.mxu0 0.0
  %1641 = vmatpush1.msra.mxu0 0.0
  %1642 = vmatprep.subr.mxu0 0.0
  %1643 = vmatpush1.msra.mxu0 0.0
  %1644 = vmatprep.subr.mxu0 0.0
  %1645 = vmatpush1.msra.mxu0 0.0
  %1646 = vmatprep.subr.mxu0 0.0
  %1647 = vmatpush1.msra.mxu0 0.0
  %1648 = vmatprep.subr.mxu0 0.0
  %1649 = vmatpush1.msra.mxu0 0.0
  %1650 = vmatprep.subr.mxu0 0.0
  %1651 = vmatpush1.msra.mxu0 0.0
  %1652 = vmatprep.subr.mxu0 0.0
  %1653 = vmatpush1.msra.mxu0 0.0
  %1654 = vmatprep.subr.mxu0 0.0
  %1655 = vmatpush1.msra.mxu0 0.0
  %1656 = vmatprep.subr.mxu0 0.0
  %1657 = vmatpush1.msra.mxu0 0.0
  %1658 = vmatprep.subr.mxu0 0.0
  %1659 = vmatpush1.msra.mxu0 0.0
  %1660 = vmatprep.subr.mxu0 0.0
  %1661 = vmatpush1.msra.mxu0 0.0
  %1662 = vmatprep.subr.mxu0 0.0
  %1663 = vmatpush1.msra.mxu0 0.0
  %1664 = vmatprep.subr.mxu0 0.0
  %1665 = vmatpush1.msra.mxu0 0.0
  %1666 = vmatprep.subr.mxu0 0.0
  %1667 = vmatpush1.msra.mxu0 0.0
  %1668 = vmatprep.subr.mxu0 0.0
  %1669 = vmatpush1.msra.mxu0 0.0
  %1670 = vmatprep.subr.mxu0 0.0
  %1671 = vmatpush1.msra.mxu0 0.0
  %1672 = vmatprep.subr.mxu0 0.0
  %1673 = vmatpush1.msra.mxu0 0.0
  %1674 = vmatprep.subr.mxu0 0.0
  %1675 = vmatpush1.msra.mxu0 0.0
  %1676 = vmatprep.subr.mxu0 0.0
  %1677 = vmatpush1.msra.mxu0 0.0
  %1678 = vmatprep.subr.mxu0 0.0
  %1679 = vmatpush1.msra.mxu0 0.0
  %1680 = vmatprep.subr.mxu0 0.0
  %1681 = vmatpush1.msra.mxu0 0.0
  %1682 = vmatprep.subr.mxu0 0.0
  %1683 = vmatpush1.msra.mxu0 0.0
  %1684 = vmatprep.subr.mxu0 0.0
  %1685 = vmatpush1.msra.mxu0 0.0
  %1686 = vmatprep.mubr.f32.mxu0 0.0
  %1687 = vmatmul.mubr.f32.gmra.mrb[0].mxu0 %v1620
  %v1688 = vpop.f32.mrb[0].mxu0
  %v1689 = vadd.f32 %v906, %v1688
  %v1690 = vpop.f32.mrb[0].mxu0
  %1691 = vdwg.mxu0
  %v1692 = vxor.u32 %v1689, 2147483648
  %v1693 = vmul.f32 %v1692, 1.442695
  %v1694 = vpow.pop %v1693
  %v1695 = vadd.f32 %v1694, 1.0
  %v1696 = vrcp.pop %v1695
  %v1697 = vmul.f32 1.0, %v1696
  %v1698 = vtanh.pop %v1689
  %v1699 = vmul.f32 %v1697, %v1607
  %1701 = vrot.lane.b32.xlu0 %v1698, 64
  %v1702 = vpop.permute.xlu0 %1701
  %v1704 = vmul.f32 %v1697, %v1702
  %1706 = vrot.lane.b32.xlu0 %v1704, 32
  %v1707 = vpop.permute.xlu0 %1706
  %v1709 = vadd.f32 %v1699, %v1707
  %v1710 = vtanh.pop %v1709
  %1712 = vrot.lane.b32.xlu0 %v1710, 64
  %v1713 = vpop.permute.xlu0 %1712
  %v1715 = vmul.f32 %v1697, %v1713
  %1717 = vrot.lane.b32.xlu0 %v1715, 32
  %v1718 = vpop.permute.xlu0 %1717
  %s1720 = scalar_lea.vmem [#allocation2], 56
  %1721 = vst.msk [vmem:[%s1720] sm:$0xff] %vm200, %v1718
  %v1722 = vld [vmem:[%s2] sm:$0xff]
  %v1723 = vld [vmem:[%s2 + $0x8] sm:$0xff]
  %v1724 = vld [vmem:[%s2 + $0x10] sm:$0xff]
  %v1725 = vld [vmem:[%s2 + $0x18] sm:$0xff]
  %v1726 = vld [vmem:[%s2 + $0x20] sm:$0x1]
  %v1727 = vld [vmem:[#allocation2] sm:$0xff]
  %v1728 = vld [vmem:[#allocation2 + $0x8] sm:$0xff]
  %v1729 = vld [vmem:[#allocation2 + $0x10] sm:$0xff]
  %v1730 = vld [vmem:[#allocation2 + $0x18] sm:$0xff]
  %v1731 = vld [vmem:[#allocation2 + $0x20] sm:$0xff]
  %v1732 = vld [vmem:[#allocation2 + $0x28] sm:$0xff]
  %v1733 = vld [vmem:[#allocation2 + $0x30] sm:$0xff]
  %v1734 = vld [vmem:[#allocation2 + $0x38] sm:$0xff]
  %v1735 = vlaneseq
  %v1736 = vshrl.u32 %v1735, 7
  %v1737 = vsub.s32 0, %v1736
  %v1738 = vrot.slane %v1726, %v1737
  %v1740 = vsel %vm200, %v1727, 0
  %v1743 = vsel %vm200, %v1728, 0
  %v1746 = vsel %vm200, %v1729, 0
  %v1749 = vsel %vm200, %v1730, 0
  %v1752 = vsel %vm200, %v1731, 0
  %v1755 = vsel %vm200, %v1732, 0
  %v1758 = vsel %vm200, %v1733, 0
  %v1761 = vsel %vm200, %v1734, 0
  %1763 = vmatprep.subr.mxu0 0.0
  %1764 = vmatpush1.msra.mxu0 %v1722
  %1765 = vmatprep.subr.mxu0 0.0
  %1766 = vmatpush1.msra.mxu0 %v1723
  %1767 = vmatprep.subr.mxu0 0.0
  %1768 = vmatpush1.msra.mxu0 %v1724
  %1769 = vmatprep.subr.mxu0 0.0
  %1770 = vmatpush1.msra.mxu0 %v1725
  %1771 = vmatprep.subr.mxu0 0.0
  %1772 = vmatpush1.msra.mxu0 0.0
  %1773 = vmatprep.subr.mxu0 0.0
  %1774 = vmatpush1.msra.mxu0 0.0
  %1775 = vmatprep.subr.mxu0 0.0
  %1776 = vmatpush1.msra.mxu0 0.0
  %1777 = vmatprep.subr.mxu0 0.0
  %1778 = vmatpush1.msra.mxu0 0.0
  %1779 = vmatprep.subr.mxu0 0.0
  %1780 = vmatpush1.msra.mxu0 0.0
  %1781 = vmatprep.subr.mxu0 0.0
  %1782 = vmatpush1.msra.mxu0 0.0
  %1783 = vmatprep.subr.mxu0 0.0
  %1784 = vmatpush1.msra.mxu0 0.0
  %1785 = vmatprep.subr.mxu0 0.0
  %1786 = vmatpush1.msra.mxu0 0.0
  %1787 = vmatprep.subr.mxu0 0.0
  %1788 = vmatpush1.msra.mxu0 0.0
  %1789 = vmatprep.subr.mxu0 0.0
  %1790 = vmatpush1.msra.mxu0 0.0
  %1791 = vmatprep.subr.mxu0 0.0
  %1792 = vmatpush1.msra.mxu0 0.0
  %1793 = vmatprep.subr.mxu0 0.0
  %1794 = vmatpush1.msra.mxu0 0.0
  %1795 = vmatprep.subr.mxu0 0.0
  %1796 = vmatpush1.msra.mxu0 0.0
  %1797 = vmatprep.subr.mxu0 0.0
  %1798 = vmatpush1.msra.mxu0 0.0
  %1799 = vmatprep.subr.mxu0 0.0
  %1800 = vmatpush1.msra.mxu0 0.0
  %1801 = vmatprep.subr.mxu0 0.0
  %1802 = vmatpush1.msra.mxu0 0.0
  %1803 = vmatprep.subr.mxu0 0.0
  %1804 = vmatpush1.msra.mxu0 0.0
  %1805 = vmatprep.subr.mxu0 0.0
  %1806 = vmatpush1.msra.mxu0 0.0
  %1807 = vmatprep.subr.mxu0 0.0
  %1808 = vmatpush1.msra.mxu0 0.0
  %1809 = vmatprep.subr.mxu0 0.0
  %1810 = vmatpush1.msra.mxu0 0.0
  %1811 = vmatprep.subr.mxu0 0.0
  %1812 = vmatpush1.msra.mxu0 0.0
  %1813 = vmatprep.subr.mxu0 0.0
  %1814 = vmatpush1.msra.mxu0 0.0
  %1815 = vmatprep.subr.mxu0 0.0
  %1816 = vmatpush1.msra.mxu0 0.0
  %1817 = vmatprep.subr.mxu0 0.0
  %1818 = vmatpush1.msra.mxu0 0.0
  %1819 = vmatprep.subr.mxu0 0.0
  %1820 = vmatpush1.msra.mxu0 0.0
  %1821 = vmatprep.subr.mxu0 0.0
  %1822 = vmatpush1.msra.mxu0 0.0
  %1823 = vmatprep.subr.mxu0 0.0
  %1824 = vmatpush1.msra.mxu0 0.0
  %1825 = vmatprep.subr.mxu0 0.0
  %1826 = vmatpush1.msra.mxu0 0.0
  %1827 = vmatprep.mubr.f32.mxu0 0.0
  %1828 = vmatmul.mubr.f32.gmra.mrb[0].mxu0 %v1740
  %v1829 = vpop.f32.mrb[0].mxu0
  %v1830 = vadd.f32 %v1738, %v1829
  %v1831 = vpop.f32.mrb[0].mxu0
  %1832 = vmatprep.mubr.f32.mxu0 0.0
  %1833 = vmatmul.mubr.f32.gmra.mrb[0].mxu0 %v1743
  %v1834 = vpop.f32.mrb[0].mxu0
  %v1835 = vadd.f32 %v1738, %v1834
  %v1836 = vpop.f32.mrb[0].mxu0
  %1837 = vmatprep.mubr.f32.mxu0 0.0
  %1838 = vmatmul.mubr.f32.gmra.mrb[0].mxu0 %v1746
  %v1839 = vpop.f32.mrb[0].mxu0
  %v1840 = vadd.f32 %v1738, %v1839
  %v1841 = vpop.f32.mrb[0].mxu0
  %1842 = vmatprep.mubr.f32.mxu0 0.0
  %1843 = vmatmul.mubr.f32.gmra.mrb[0].mxu0 %v1749
  %v1844 = vpop.f32.mrb[0].mxu0
  %v1845 = vadd.f32 %v1738, %v1844
  %v1846 = vpop.f32.mrb[0].mxu0
  %1847 = vmatprep.mubr.f32.mxu0 0.0
  %1848 = vmatmul.mubr.f32.gmra.mrb[0].mxu0 %v1752
  %v1849 = vpop.f32.mrb[0].mxu0
  %v1850 = vadd.f32 %v1738, %v1849
  %v1851 = vpop.f32.mrb[0].mxu0
  %1852 = vmatprep.mubr.f32.mxu0 0.0
  %1853 = vmatmul.mubr.f32.gmra.mrb[0].mxu0 %v1755
  %v1854 = vpop.f32.mrb[0].mxu0
  %v1855 = vadd.f32 %v1738, %v1854
  %v1856 = vpop.f32.mrb[0].mxu0
  %1857 = vmatprep.mubr.f32.mxu0 0.0
  %1858 = vmatmul.mubr.f32.gmra.mrb[0].mxu0 %v1758
  %v1859 = vpop.f32.mrb[0].mxu0
  %v1860 = vadd.f32 %v1738, %v1859
  %v1861 = vpop.f32.mrb[0].mxu0
  %1862 = vmatprep.mubr.f32.mxu0 0.0
  %1863 = vmatmul.mubr.f32.gmra.mrb[0].mxu0 %v1761
  %v1864 = vpop.f32.mrb[0].mxu0
  %v1865 = vadd.f32 %v1738, %v1864
  %v1866 = vpop.f32.mrb[0].mxu0
  %1867 = vdwg.mxu0
  %vm1868 = vcmask 31744
  %1869 = vst.msk [vmem:[%s4] sm:$0xff] %vm1868, %v1830
  %1870 = vst.msk [vmem:[%s4 + $0x8] sm:$0xff] %vm1868, %v1835
  %1871 = vst.msk [vmem:[%s4 + $0x10] sm:$0xff] %vm1868, %v1840
  %1872 = vst.msk [vmem:[%s4 + $0x18] sm:$0xff] %vm1868, %v1845
  %1873 = vst.msk [vmem:[%s4 + $0x20] sm:$0xff] %vm1868, %v1850
  %1874 = vst.msk [vmem:[%s4 + $0x28] sm:$0xff] %vm1868, %v1855
  %1875 = vst.msk [vmem:[%s4 + $0x30] sm:$0xff] %vm1868, %v1860
  %1876 = vst.msk [vmem:[%s4 + $0x38] sm:$0xff] %vm1868, %v1865
  // Predicated region
  $region14: #{tae_forward.1} parent=0 // pred_check
    _
  $region15: #{tae_forward.1} parent=0 // pred_check_branch
    %1878 = sbr.rel (0) target = $region17
  $region16: #{tae_forward.1} parent=0 // pred_region
    _
  $region17: #{tae_forward.1} parent=0 // pred_fallthru
    _
  // Predicated region
  $region18: #{tae_forward.1} parent=0 // pred_check
    _
  $region19: #{tae_forward.1} parent=0 // pred_check_branch
    %1880 = sbr.rel (0) target = $region21
  $region20: #{tae_forward.1} parent=0 // pred_region
    _
  $region21: #{tae_forward.1} parent=0 // pred_fallthru
    _
  // Predicated region
  $region22: #{tae_forward.1} parent=0 // pred_check
    _
  $region23: #{tae_forward.1} parent=0 // pred_check_branch
    %1882 = sbr.rel (0) target = $region25
  $region24: #{tae_forward.1} parent=0 // pred_region
    _
  $region25: #{tae_forward.1} parent=0 // pred_fallthru
    _
  // Predicated region
  $region26: #{tae_forward.1} parent=0 // pred_check
    _
  $region27: #{tae_forward.1} parent=0 // pred_check_branch
    %1884 = sbr.rel (0) target = $region29
  $region28: #{tae_forward.1} parent=0 // pred_region
    _
  $region29: #{tae_forward.1} parent=0 // pred_fallthru
    _

</llo_original>
